<compile_context>
chip_gen: v6e
topology: v6e:2x2x1
jax: 0.10.0
libtpu: 0.0.40
codegen_flags: <defaults>
</compile_context>

<pallas_src>
import functools

import numpy as np
import jax
import jax.numpy as jnp
from jax.experimental import pallas as pl
from jax.experimental.pallas import tpu as pltpu


# ----------------------------------------------------------------------------
# Static architecture constants (toy stand-in encoder)
# ----------------------------------------------------------------------------
IMG = 16                     # input spatial size
CIN = 3                      # input channels
C1 = 8                       # stage-1 channels
C2 = 16                      # stage-2 channels (deepest feature map)
H1 = W1 = IMG // 2           # 8
H2 = W2 = IMG // 4           # 4
K1 = 3 * 3 * CIN             # 27  conv1 contraction
K1P = 32                     # conv1 contraction padded (27 taps + bias col + zeros)
HIDDEN = 2048                # fc hidden width
FEAT = C2 * H2 * W2          # 256 = linear_in_features
NCLS_PAD = 128               # classifier lanes padded to a full lane group
BATCH_PAD = 8                # batch rows padded to a full sublane group
TILE_N = 512                 # fc hidden tile (grid axis)


# ----------------------------------------------------------------------------
# Fused kernel: encoder (step 0 only, cached in scratch) + tiled head
# ----------------------------------------------------------------------------
def _fused_kernel(p1_ref, w1_ref, s2_ref, w2_ref, b2_ref,
                  fcw_ref, fcb_ref, clsw_ref, clsb_ref,
                  out_ref, feat_ref, *, batch):
    n = pl.program_id(0)
    n_hw2 = H2 * W2  # 16 spatial positions of the deepest feature map

    # ---- encoder + flatten: computed once, cached in VMEM scratch ----------
    @pl.when(n == 0)
    def _():
        # conv1 (3x3, s2, p1) as one matmul; bias folded into padded column 27.
        y1 = jnp.dot(p1_ref[...], w1_ref[...],
                     preferred_element_type=jnp.float32)            # (B*64, C1)
        y1 = jnp.maximum(y1, 0.0).astype(jnp.bfloat16)

        # conv2 im2col done in-kernel: one 0/1 tap-gather matmul (MXU gather),
        # then 9 accumulated per-tap matmuls.  Gather rows are ordered
        # (tap, h2*W2+w2, b); padding taps are all-zero rows of s2.
        g2 = jnp.dot(s2_ref[...], y1,
                     preferred_element_type=jnp.float32)            # (9*16*B, C1)
        g2 = g2.astype(jnp.bfloat16)

        acc2 = jnp.zeros((n_hw2 * batch, C2), jnp.float32)
        for t in range(9):
            lo = t * n_hw2 * batch
            hi = lo + n_hw2 * batch
            acc2 = acc2 + jnp.dot(g2[lo:hi, :], w2_ref[t],
                                  preferred_element_type=jnp.float32)
        y2 = jnp.maximum(acc2 + b2_ref[...], 0.0).astype(jnp.bfloat16)  # (16*B, C2)

        # torch.flatten(x, 1): assemble the (BATCH_PAD, FEAT) feature slab.
        # fc_w rows were pre-permuted to this (h, w, c) order, so no
        # NHWC->NCHW transpose is needed at runtime.
        feat_ref[...] = jnp.zeros_like(feat_ref)
        for hw in range(n_hw2):
            feat_ref[0:batch, hw * C2:(hw + 1) * C2] = \
                y2[hw * batch:(hw + 1) * batch, :]

    # ---- head: fc -> dropout(eval) -> relu -> classify, tiled over HIDDEN --
    h = jnp.dot(feat_ref[...], fcw_ref[...],
                preferred_element_type=jnp.float32)        # (BATCH_PAD, TILE_N) f32
    # F.dropout(p=0.5, training=False) == identity; bias + ReLU epilogue in f32,
    # single downcast before the second MXU pass (v5e-friendly).
    h = jnp.maximum(h + fcb_ref[...], 0.0).astype(jnp.bfloat16)

    @pl.when(n == 0)
    def _():
        out_ref[...] = jnp.zeros_like(out_ref)

    out_ref[...] += jnp.dot(h, clsw_ref[...],
                            preferred_element_type=jnp.float32)  # (BATCH_PAD, 128)

    @pl.when(n == pl.num_programs(0) - 1)
    def _():
        out_ref[...] += clsb_ref[...]


# ----------------------------------------------------------------------------
# Host-side one-time preprocessing of the raw input (feeds the single kernel)
# ----------------------------------------------------------------------------
def _build_patches(x_nchw):
    """im2col for conv1 (3x3, s2, p1) -> (B*H1*W1, K1P) bf16.

    Rows ordered (b, h1, w1); columns ordered (kh, kw, cin) in [0, 27),
    column 27 is a ones column (folds the conv1 bias), columns 28..31 zero.
    """
    B, C, H, W = x_nchw.shape
    x = jnp.transpose(x_nchw, (0, 2, 3, 1))                        # NHWC
    xp = jnp.pad(x, ((0, 0), (1, 1), (1, 1), (0, 0)))
    Ho, Wo = H // 2, W // 2
    taps = [xp[:, di:di + 2 * Ho:2, dj:dj + 2 * Wo:2, :]
            for di in range(3) for dj in range(3)]
    p = jnp.stack(taps, axis=3).reshape(B * Ho * Wo, 9 * C)
    ones = jnp.ones((B * Ho * Wo, 1), p.dtype)
    zeros = jnp.zeros((B * Ho * Wo, K1P - 9 * C - 1), p.dtype)
    return jnp.concatenate([p, ones, zeros], axis=1).astype(jnp.bfloat16)


# ----------------------------------------------------------------------------
# Forward pass
# ----------------------------------------------------------------------------
@functools.partial(jax.jit, static_argnames=("num_classes",))
def pretrain_classifier_forward(x_nchw, packed, *, num_classes):
    B = x_nchw.shape[0]
    p1 = _build_patches(x_nchw)

    m1 = B * H1 * W1             # 128 conv1 output rows
    m2 = 9 * H2 * W2 * B         # 288 gathered conv2 tap rows
    nt = HIDDEN // TILE_N        # 4 grid steps over the hidden dimension

    kernel = functools.partial(_fused_kernel, batch=B)
    out_padded = pl.pallas_call(
        kernel,
        out_shape=jax.ShapeDtypeStruct((BATCH_PAD, NCLS_PAD), jnp.float32),
        grid=(nt,),
        in_specs=[
            pl.BlockSpec((m1, K1P), lambda n: (0, 0)),            # p1    (resident)
            pl.BlockSpec((K1P, C1), lambda n: (0, 0)),            # w1    (resident)
            pl.BlockSpec((m2, m1), lambda n: (0, 0)),             # s2    (resident)
            pl.BlockSpec((9, C1, C2), lambda n: (0, 0, 0)),       # w2 taps
            pl.BlockSpec((1, C2), lambda n: (0, 0)),              # conv2 bias
            pl.BlockSpec((FEAT, TILE_N), lambda n: (0, n)),       # fc_w  (pipelined)
            pl.BlockSpec((1, TILE_N), lambda n: (0, n)),          # fc_b
            pl.BlockSpec((TILE_N, NCLS_PAD), lambda n: (n, 0)),   # cls_w (pipelined)
            pl.BlockSpec((1, NCLS_PAD), lambda n: (0, 0)),        # cls_b
        ],
        out_specs=pl.BlockSpec((BATCH_PAD, NCLS_PAD), lambda n: (0, 0)),
        scratch_shapes=[pltpu.VMEM((BATCH_PAD, FEAT), jnp.bfloat16)],
        compiler_params=pltpu.CompilerParams(
            # Single axis is a reduction (output accumulator + scratch reuse).
            dimension_semantics=("arbitrary",),
        ),
    )(p1, packed["w1"], packed["s2"], packed["w2"], packed["b2"],
      packed["fc_w"], packed["fc_b"], packed["cls_w"], packed["cls_b"])

    return out_padded[:B, :num_classes]


# ----------------------------------------------------------------------------
# Parameters (torch-like layout) and one-time packing into kernel layouts
# ----------------------------------------------------------------------------
def make_params(key, num_classes=10):
    """Deterministic random stand-in parameters in a torch-like layout (f32)."""
    ks = jax.random.split(key, 8)

    def lin_init(k, fan_in, shape):
        bound = float(1.0 / np.sqrt(fan_in))
        return jax.random.uniform(k, shape, jnp.float32, -bound, bound)

    return {
        # conv weights in torch Conv2d layout (Cout, Cin, kh, kw)
        "conv1_w": lin_init(ks[0], K1, (C1, CIN, 3, 3)),
        "conv1_b": lin_init(ks[1], K1, (C1,)),
        "conv2_w": lin_init(ks[2], 9 * C1, (C2, C1, 3, 3)),
        "conv2_b": lin_init(ks[3], 9 * C1, (C2,)),
        # fc / classify in (in, out) layout; fc_w rows follow torch.flatten on
        # an NCHW feature map, i.e. row index = c*(H2*W2) + h*W2 + w.
        "fc_w": lin_init(ks[4], FEAT, (FEAT, HIDDEN)),
        "fc_b": lin_init(ks[5], FEAT, (HIDDEN,)),
        "cls_w": lin_init(ks[6], HIDDEN, (HIDDEN, num_classes)),
        "cls_b": lin_init(ks[7], HIDDEN, (num_classes,)),
    }


def _conv2_tap_gather(batch):
    """0/1 matrix implementing conv2's (3x3, s2, p1) im2col row-gather.

    Maps y1 rows ordered (b, h1, w1) to gathered rows ordered (tap, h2w2, b);
    out-of-range taps (the conv zero padding) are all-zero rows.
    """
    rows = 9 * H2 * W2 * batch
    cols = batch * H1 * W1
    s = np.zeros((rows, cols), np.float32)
    for di in range(3):
        for dj in range(3):
            t = di * 3 + dj
            for h2 in range(H2):
                for w2 in range(W2):
                    h1 = 2 * h2 + di - 1
                    w1 = 2 * w2 + dj - 1
                    if 0 <= h1 < H1 and 0 <= w1 < W1:
                        for b in range(batch):
                            r = t * (H2 * W2 * batch) + (h2 * W2 + w2) * batch + b
                            c = b * (H1 * W1) + h1 * W1 + w1
                            s[r, c] = 1.0
    return s


def prepare_params(params, batch, num_classes):
    """One-time repack into fused-kernel layouts: bf16 weights, lane padding,
    conv1 bias folded into the padded contraction, fc_w rows permuted to the
    kernel's (h, w, c) flatten order, classifier padded to 128 lanes."""
    # conv1 matmul weight, rows ordered (kh, kw, cin); bias in row K1.
    w1 = np.zeros((K1P, C1), np.float32)
    w1[:K1] = np.asarray(params["conv1_w"]).transpose(2, 3, 1, 0).reshape(K1, C1)
    w1[K1] = np.asarray(params["conv1_b"])

    # conv2 per-tap (Cin, Cout) matmul weights.
    w2 = np.asarray(params["conv2_w"]).transpose(2, 3, 1, 0).reshape(9, C1, C2)
    b2 = np.asarray(params["conv2_b"]).reshape(1, C2)

    # fc_w rows permuted from torch NCHW-flatten order (c, h, w) to (h, w, c).
    fc_w = np.asarray(params["fc_w"]).reshape(C2, H2 * W2, HIDDEN)
    fc_w = fc_w.transpose(1, 0, 2).reshape(FEAT, HIDDEN)
    fc_b = np.asarray(params["fc_b"]).reshape(1, HIDDEN)

    # classifier padded to 128 lanes with zeros (exactness preserved; logits
    # are sliced back to num_classes outside the kernel).
    cls_w = np.zeros((HIDDEN, NCLS_PAD), np.float32)
    cls_w[:, :num_classes] = np.asarray(params["cls_w"])
    cls_b = np.zeros((1, NCLS_PAD), np.float32)
    cls_b[:, :num_classes] = np.asarray(params["cls_b"])

    bf16 = jnp.bfloat16
    return {
        "w1": jnp.asarray(w1, bf16),
        "s2": jnp.asarray(_conv2_tap_gather(batch), bf16),
        "w2": jnp.asarray(w2, bf16),
        "b2": jnp.asarray(b2, jnp.float32),
        "fc_w": jnp.asarray(fc_w, bf16),
        "fc_b": jnp.asarray(fc_b, jnp.float32),
        "cls_w": jnp.asarray(cls_w, bf16),
        "cls_b": jnp.asarray(cls_b, jnp.float32),
    }


# ----------------------------------------------------------------------------
# Independent pure-JAX f32 reference (validates gather/ordering/padding logic)
# ----------------------------------------------------------------------------
def _reference_forward(x_nchw, params):
    B = x_nchw.shape[0]
    x = jnp.transpose(x_nchw, (0, 2, 3, 1))

    def conv3x3_s2_relu(x_nhwc, w, b):
        xp = jnp.pad(x_nhwc, ((0, 0), (1, 1), (1, 1), (0, 0)))
        Ho, Wo = x_nhwc.shape[1] // 2, x_nhwc.shape[2] // 2
        acc = jnp.zeros((B, Ho, Wo, w.shape[0]), jnp.float32)
        for di in range(3):
            for dj in range(3):
                patch = xp[:, di:di + 2 * Ho:2, dj:dj + 2 * Wo:2, :]
                acc = acc + jnp.einsum("bhwc,oc->bhwo", patch, w[:, :, di, dj])
        return jnp.maximum(acc + b, 0.0)

    y1 = conv3x3_s2_relu(x, params["conv1_w"], params["conv1_b"])
    y2 = conv3x3_s2_relu(y1, params["conv2_w"], params["conv2_b"])
    feat = jnp.transpose(y2, (0, 3, 1, 2)).reshape(B, -1)   # torch.flatten on NCHW
    h = jnp.maximum(feat @ params["fc_w"] + params["fc_b"], 0.0)
    return h @ params["cls_w"] + params["cls_b"]


if __name__ == "__main__":
    key = jax.random.PRNGKey(0)
    k_x, k_p = jax.random.split(key)

    num_classes = 10
    x = jax.random.normal(k_x, (2, CIN, IMG, IMG), dtype=jnp.float32)  # NCHW, batch=2
    params = make_params(k_p, num_classes=num_classes)
    packed = prepare_params(params, batch=x.shape[0], num_classes=num_classes)

    logits = pretrain_classifier_forward(x, packed, num_classes=num_classes)
    jax.block_until_ready(logits)
    assert logits.shape == (2, num_classes), logits.shape

    # Kernel uses bf16 matmul inputs with f32 accumulation; deviation from the
    # f32 reference is ~1e-3 at these scales, so 2e-2 is a safe bound that
    # still catches any gather/ordering/padding bug.
    ref = _reference_forward(x, params)
    max_err = float(jnp.max(jnp.abs(logits - ref)))
    assert max_err < 2e-2, max_err

    print("KERNEL_OK")
</pallas_src>

<mosaic_0001>
module attributes {stable_mosaic.version = 11 : i64} {
  func.func @_fused_kernel(%arg0: i32, %arg1: memref<128x32xbf16, #tpu.memory_space<vmem>>, %arg2: memref<32x8xbf16, #tpu.memory_space<vmem>>, %arg3: memref<288x128xbf16, #tpu.memory_space<vmem>>, %arg4: memref<9x8x16xbf16, #tpu.memory_space<vmem>>, %arg5: memref<1x16xf32, #tpu.memory_space<vmem>>, %arg6: memref<256x512xbf16, #tpu.memory_space<vmem>>, %arg7: memref<1x512xf32, #tpu.memory_space<vmem>>, %arg8: memref<512x128xbf16, #tpu.memory_space<vmem>>, %arg9: memref<1x128xf32, #tpu.memory_space<vmem>>, %arg10: memref<8x128xf32, #tpu.memory_space<vmem>>, %arg11: memref<8x256xbf16, #tpu.memory_space<vmem>>) attributes {dimension_semantics = [#tpu.dimension_semantics<arbitrary>], iteration_bounds = array<i64: 4>, scalar_prefetch = 0 : i64, scratch_operands = 1 : i64, tpu.core_type = #tpu.core_type<tc>, window_params = [{pipeline_mode = #tpu.pipeline_mode<synchronous>, transform_indices = @transform_0, window_bounds = array<i64: 128, 32>}, {pipeline_mode = #tpu.pipeline_mode<synchronous>, transform_indices = @transform_1, window_bounds = array<i64: 32, 8>}, {pipeline_mode = #tpu.pipeline_mode<synchronous>, transform_indices = @transform_2, window_bounds = array<i64: 288, 128>}, {pipeline_mode = #tpu.pipeline_mode<synchronous>, transform_indices = @transform_3, window_bounds = array<i64: 9, 8, 16>}, {pipeline_mode = #tpu.pipeline_mode<synchronous>, transform_indices = @transform_4, window_bounds = array<i64: 1, 16>}, {transform_indices = @transform_5, window_bounds = array<i64: 256, 512>}, {transform_indices = @transform_6, window_bounds = array<i64: 1, 512>}, {transform_indices = @transform_7, window_bounds = array<i64: 512, 128>}, {pipeline_mode = #tpu.pipeline_mode<synchronous>, transform_indices = @transform_8, window_bounds = array<i64: 1, 128>}, {pipeline_mode = #tpu.pipeline_mode<synchronous>, transform_indices = @transform_9, window_bounds = array<i64: 8, 128>}]} {
    %c0_i32 = arith.constant 0 : i32
    %0 = arith.cmpi eq, %arg0, %c0_i32 : i32
    %1 = arith.extui %0 : i1 to i32
    %c0_i32_0 = arith.constant 0 : i32
    %2 = arith.cmpi ne, %1, %c0_i32_0 : i32
    scf.if %2 {
      %c0_17 = arith.constant 0 : index
      %c0_18 = arith.constant 0 : index
      %23 = vector.load %arg1[%c0_17, %c0_18] : memref<128x32xbf16, #tpu.memory_space<vmem>>, vector<128x32xbf16>
      %c0_19 = arith.constant 0 : index
      %c0_20 = arith.constant 0 : index
      %24 = vector.load %arg2[%c0_19, %c0_20] : memref<32x8xbf16, #tpu.memory_space<vmem>>, vector<32x8xbf16>
      %cst_21 = arith.constant dense<0.000000e+00> : vector<128x8xf32>
      %25 = tpu.matmul %23, %24, %cst_21 {dimension_numbers = #tpu.dot_dimension_numbers<[1], [0], [0], [1], [0, 0, 1, 1], [], []>} : vector<128x32xbf16>, vector<32x8xbf16>, vector<128x8xf32> -> vector<128x8xf32>
      %cst_22 = arith.constant 0.000000e+00 : f32
      %26 = vector.broadcast %cst_22 : f32 to vector<128x8xf32>
      %27 = arith.maximumf %25, %26 : vector<128x8xf32>
      %28 = arith.truncf %27 : vector<128x8xf32> to vector<128x8xbf16>
      %c0_23 = arith.constant 0 : index
      %c0_24 = arith.constant 0 : index
      %29 = vector.load %arg3[%c0_23, %c0_24] : memref<288x128xbf16, #tpu.memory_space<vmem>>, vector<288x128xbf16>
      %cst_25 = arith.constant dense<0.000000e+00> : vector<288x8xf32>
      %30 = tpu.matmul %29, %28, %cst_25 {dimension_numbers = #tpu.dot_dimension_numbers<[1], [0], [0], [1], [0, 0, 1, 1], [], []>} : vector<288x128xbf16>, vector<128x8xbf16>, vector<288x8xf32> -> vector<288x8xf32>
      %31 = arith.truncf %30 : vector<288x8xf32> to vector<288x8xbf16>
      %cst_26 = arith.constant 0.000000e+00 : f32
      %32 = vector.broadcast %cst_26 : f32 to vector<32x16xf32>
      %33 = vector.extract_strided_slice %31 {offsets = [0, 0], sizes = [32, 8], strides = [1, 1]} : vector<288x8xbf16> to vector<32x8xbf16>
      %c0_27 = arith.constant 0 : index
      %c0_28 = arith.constant 0 : index
      %c0_29 = arith.constant 0 : index
      %34 = vector.load %arg4[%c0_27, %c0_28, %c0_29] : memref<9x8x16xbf16, #tpu.memory_space<vmem>>, vector<1x8x16xbf16>
      %35 = vector.shape_cast %34 : vector<1x8x16xbf16> to vector<8x16xbf16>
      %cst_30 = arith.constant dense<0.000000e+00> : vector<32x16xf32>
      %36 = tpu.matmul %33, %35, %cst_30 {dimension_numbers = #tpu.dot_dimension_numbers<[1], [0], [0], [1], [0, 0, 1, 1], [], []>} : vector<32x8xbf16>, vector<8x16xbf16>, vector<32x16xf32> -> vector<32x16xf32>
      %37 = arith.addf %32, %36 : vector<32x16xf32>
      %38 = vector.extract_strided_slice %31 {offsets = [32, 0], sizes = [32, 8], strides = [1, 1]} : vector<288x8xbf16> to vector<32x8xbf16>
      %c1 = arith.constant 1 : index
      %c0_31 = arith.constant 0 : index
      %c0_32 = arith.constant 0 : index
      %39 = vector.load %arg4[%c1, %c0_31, %c0_32] : memref<9x8x16xbf16, #tpu.memory_space<vmem>>, vector<1x8x16xbf16>
      %40 = vector.shape_cast %39 : vector<1x8x16xbf16> to vector<8x16xbf16>
      %cst_33 = arith.constant dense<0.000000e+00> : vector<32x16xf32>
      %41 = tpu.matmul %38, %40, %cst_33 {dimension_numbers = #tpu.dot_dimension_numbers<[1], [0], [0], [1], [0, 0, 1, 1], [], []>} : vector<32x8xbf16>, vector<8x16xbf16>, vector<32x16xf32> -> vector<32x16xf32>
      %42 = arith.addf %37, %41 : vector<32x16xf32>
      %43 = vector.extract_strided_slice %31 {offsets = [64, 0], sizes = [32, 8], strides = [1, 1]} : vector<288x8xbf16> to vector<32x8xbf16>
      %c2 = arith.constant 2 : index
      %c0_34 = arith.constant 0 : index
      %c0_35 = arith.constant 0 : index
      %44 = vector.load %arg4[%c2, %c0_34, %c0_35] : memref<9x8x16xbf16, #tpu.memory_space<vmem>>, vector<1x8x16xbf16>
      %45 = vector.shape_cast %44 : vector<1x8x16xbf16> to vector<8x16xbf16>
      %cst_36 = arith.constant dense<0.000000e+00> : vector<32x16xf32>
      %46 = tpu.matmul %43, %45, %cst_36 {dimension_numbers = #tpu.dot_dimension_numbers<[1], [0], [0], [1], [0, 0, 1, 1], [], []>} : vector<32x8xbf16>, vector<8x16xbf16>, vector<32x16xf32> -> vector<32x16xf32>
      %47 = arith.addf %42, %46 : vector<32x16xf32>
      %48 = vector.extract_strided_slice %31 {offsets = [96, 0], sizes = [32, 8], strides = [1, 1]} : vector<288x8xbf16> to vector<32x8xbf16>
      %c3 = arith.constant 3 : index
      %c0_37 = arith.constant 0 : index
      %c0_38 = arith.constant 0 : index
      %49 = vector.load %arg4[%c3, %c0_37, %c0_38] : memref<9x8x16xbf16, #tpu.memory_space<vmem>>, vector<1x8x16xbf16>
      %50 = vector.shape_cast %49 : vector<1x8x16xbf16> to vector<8x16xbf16>
      %cst_39 = arith.constant dense<0.000000e+00> : vector<32x16xf32>
      %51 = tpu.matmul %48, %50, %cst_39 {dimension_numbers = #tpu.dot_dimension_numbers<[1], [0], [0], [1], [0, 0, 1, 1], [], []>} : vector<32x8xbf16>, vector<8x16xbf16>, vector<32x16xf32> -> vector<32x16xf32>
      %52 = arith.addf %47, %51 : vector<32x16xf32>
      %53 = vector.extract_strided_slice %31 {offsets = [128, 0], sizes = [32, 8], strides = [1, 1]} : vector<288x8xbf16> to vector<32x8xbf16>
      %c4 = arith.constant 4 : index
      %c0_40 = arith.constant 0 : index
      %c0_41 = arith.constant 0 : index
      %54 = vector.load %arg4[%c4, %c0_40, %c0_41] : memref<9x8x16xbf16, #tpu.memory_space<vmem>>, vector<1x8x16xbf16>
      %55 = vector.shape_cast %54 : vector<1x8x16xbf16> to vector<8x16xbf16>
      %cst_42 = arith.constant dense<0.000000e+00> : vector<32x16xf32>
      %56 = tpu.matmul %53, %55, %cst_42 {dimension_numbers = #tpu.dot_dimension_numbers<[1], [0], [0], [1], [0, 0, 1, 1], [], []>} : vector<32x8xbf16>, vector<8x16xbf16>, vector<32x16xf32> -> vector<32x16xf32>
      %57 = arith.addf %52, %56 : vector<32x16xf32>
      %58 = vector.extract_strided_slice %31 {offsets = [160, 0], sizes = [32, 8], strides = [1, 1]} : vector<288x8xbf16> to vector<32x8xbf16>
      %c5 = arith.constant 5 : index
      %c0_43 = arith.constant 0 : index
      %c0_44 = arith.constant 0 : index
      %59 = vector.load %arg4[%c5, %c0_43, %c0_44] : memref<9x8x16xbf16, #tpu.memory_space<vmem>>, vector<1x8x16xbf16>
      %60 = vector.shape_cast %59 : vector<1x8x16xbf16> to vector<8x16xbf16>
      %cst_45 = arith.constant dense<0.000000e+00> : vector<32x16xf32>
      %61 = tpu.matmul %58, %60, %cst_45 {dimension_numbers = #tpu.dot_dimension_numbers<[1], [0], [0], [1], [0, 0, 1, 1], [], []>} : vector<32x8xbf16>, vector<8x16xbf16>, vector<32x16xf32> -> vector<32x16xf32>
      %62 = arith.addf %57, %61 : vector<32x16xf32>
      %63 = vector.extract_strided_slice %31 {offsets = [192, 0], sizes = [32, 8], strides = [1, 1]} : vector<288x8xbf16> to vector<32x8xbf16>
      %c6 = arith.constant 6 : index
      %c0_46 = arith.constant 0 : index
      %c0_47 = arith.constant 0 : index
      %64 = vector.load %arg4[%c6, %c0_46, %c0_47] : memref<9x8x16xbf16, #tpu.memory_space<vmem>>, vector<1x8x16xbf16>
      %65 = vector.shape_cast %64 : vector<1x8x16xbf16> to vector<8x16xbf16>
      %cst_48 = arith.constant dense<0.000000e+00> : vector<32x16xf32>
      %66 = tpu.matmul %63, %65, %cst_48 {dimension_numbers = #tpu.dot_dimension_numbers<[1], [0], [0], [1], [0, 0, 1, 1], [], []>} : vector<32x8xbf16>, vector<8x16xbf16>, vector<32x16xf32> -> vector<32x16xf32>
      %67 = arith.addf %62, %66 : vector<32x16xf32>
      %68 = vector.extract_strided_slice %31 {offsets = [224, 0], sizes = [32, 8], strides = [1, 1]} : vector<288x8xbf16> to vector<32x8xbf16>
      %c7 = arith.constant 7 : index
      %c0_49 = arith.constant 0 : index
      %c0_50 = arith.constant 0 : index
      %69 = vector.load %arg4[%c7, %c0_49, %c0_50] : memref<9x8x16xbf16, #tpu.memory_space<vmem>>, vector<1x8x16xbf16>
      %70 = vector.shape_cast %69 : vector<1x8x16xbf16> to vector<8x16xbf16>
      %cst_51 = arith.constant dense<0.000000e+00> : vector<32x16xf32>
      %71 = tpu.matmul %68, %70, %cst_51 {dimension_numbers = #tpu.dot_dimension_numbers<[1], [0], [0], [1], [0, 0, 1, 1], [], []>} : vector<32x8xbf16>, vector<8x16xbf16>, vector<32x16xf32> -> vector<32x16xf32>
      %72 = arith.addf %67, %71 : vector<32x16xf32>
      %73 = vector.extract_strided_slice %31 {offsets = [256, 0], sizes = [32, 8], strides = [1, 1]} : vector<288x8xbf16> to vector<32x8xbf16>
      %c8 = arith.constant 8 : index
      %c0_52 = arith.constant 0 : index
      %c0_53 = arith.constant 0 : index
      %74 = vector.load %arg4[%c8, %c0_52, %c0_53] : memref<9x8x16xbf16, #tpu.memory_space<vmem>>, vector<1x8x16xbf16>
      %75 = vector.shape_cast %74 : vector<1x8x16xbf16> to vector<8x16xbf16>
      %cst_54 = arith.constant dense<0.000000e+00> : vector<32x16xf32>
      %76 = tpu.matmul %73, %75, %cst_54 {dimension_numbers = #tpu.dot_dimension_numbers<[1], [0], [0], [1], [0, 0, 1, 1], [], []>} : vector<32x8xbf16>, vector<8x16xbf16>, vector<32x16xf32> -> vector<32x16xf32>
      %77 = arith.addf %72, %76 : vector<32x16xf32>
      %c0_55 = arith.constant 0 : index
      %c0_56 = arith.constant 0 : index
      %78 = vector.load %arg5[%c0_55, %c0_56] : memref<1x16xf32, #tpu.memory_space<vmem>>, vector<1x16xf32>
      %79 = vector.broadcast %78 : vector<1x16xf32> to vector<32x16xf32>
      %80 = arith.addf %77, %79 : vector<32x16xf32>
      %cst_57 = arith.constant 0.000000e+00 : f32
      %81 = vector.broadcast %cst_57 : f32 to vector<32x16xf32>
      %82 = arith.maximumf %80, %81 : vector<32x16xf32>
      %83 = arith.truncf %82 : vector<32x16xf32> to vector<32x16xbf16>
      %cst_58 = arith.constant 0.000000e+00 : bf16
      %84 = vector.broadcast %cst_58 : bf16 to vector<8x256xbf16>
      %c0_59 = arith.constant 0 : index
      %c0_60 = arith.constant 0 : index
      %85 = vector.load %arg11[%c0_59, %c0_60] : memref<8x256xbf16, #tpu.memory_space<vmem>>, vector<8x256xbf16>
      tpu.vector_store %arg11[%c0_59, %c0_60], %84 {strides = array<i32>} : memref<8x256xbf16, #tpu.memory_space<vmem>>, vector<8x256xbf16>,
      %86 = vector.extract_strided_slice %83 {offsets = [0, 0], sizes = [2, 16], strides = [1, 1]} : vector<32x16xbf16> to vector<2x16xbf16>
      %c0_61 = arith.constant 0 : index
      %c0_62 = arith.constant 0 : index
      %87 = vector.load %arg11[%c0_61, %c0_62] : memref<8x256xbf16, #tpu.memory_space<vmem>>, vector<2x16xbf16>
      tpu.vector_store %arg11[%c0_61, %c0_62], %86 {strides = array<i32>} : memref<8x256xbf16, #tpu.memory_space<vmem>>, vector<2x16xbf16>,
      %88 = vector.extract_strided_slice %83 {offsets = [2, 0], sizes = [2, 16], strides = [1, 1]} : vector<32x16xbf16> to vector<2x16xbf16>
      %c0_63 = arith.constant 0 : index
      %c16 = arith.constant 16 : index
      %89 = vector.load %arg11[%c0_63, %c16] : memref<8x256xbf16, #tpu.memory_space<vmem>>, vector<2x16xbf16>
      tpu.vector_store %arg11[%c0_63, %c16], %88 {strides = array<i32>} : memref<8x256xbf16, #tpu.memory_space<vmem>>, vector<2x16xbf16>,
      %90 = vector.extract_strided_slice %83 {offsets = [4, 0], sizes = [2, 16], strides = [1, 1]} : vector<32x16xbf16> to vector<2x16xbf16>
      %c0_64 = arith.constant 0 : index
      %c32 = arith.constant 32 : index
      %91 = vector.load %arg11[%c0_64, %c32] : memref<8x256xbf16, #tpu.memory_space<vmem>>, vector<2x16xbf16>
      tpu.vector_store %arg11[%c0_64, %c32], %90 {strides = array<i32>} : memref<8x256xbf16, #tpu.memory_space<vmem>>, vector<2x16xbf16>,
      %92 = vector.extract_strided_slice %83 {offsets = [6, 0], sizes = [2, 16], strides = [1, 1]} : vector<32x16xbf16> to vector<2x16xbf16>
      %c0_65 = arith.constant 0 : index
      %c48 = arith.constant 48 : index
      %93 = vector.load %arg11[%c0_65, %c48] : memref<8x256xbf16, #tpu.memory_space<vmem>>, vector<2x16xbf16>
      tpu.vector_store %arg11[%c0_65, %c48], %92 {strides = array<i32>} : memref<8x256xbf16, #tpu.memory_space<vmem>>, vector<2x16xbf16>,
      %94 = vector.extract_strided_slice %83 {offsets = [8, 0], sizes = [2, 16], strides = [1, 1]} : vector<32x16xbf16> to vector<2x16xbf16>
      %c0_66 = arith.constant 0 : index
      %c64 = arith.constant 64 : index
      %95 = vector.load %arg11[%c0_66, %c64] : memref<8x256xbf16, #tpu.memory_space<vmem>>, vector<2x16xbf16>
      tpu.vector_store %arg11[%c0_66, %c64], %94 {strides = array<i32>} : memref<8x256xbf16, #tpu.memory_space<vmem>>, vector<2x16xbf16>,
      %96 = vector.extract_strided_slice %83 {offsets = [10, 0], sizes = [2, 16], strides = [1, 1]} : vector<32x16xbf16> to vector<2x16xbf16>
      %c0_67 = arith.constant 0 : index
      %c80 = arith.constant 80 : index
      %97 = vector.load %arg11[%c0_67, %c80] : memref<8x256xbf16, #tpu.memory_space<vmem>>, vector<2x16xbf16>
      tpu.vector_store %arg11[%c0_67, %c80], %96 {strides = array<i32>} : memref<8x256xbf16, #tpu.memory_space<vmem>>, vector<2x16xbf16>,
      %98 = vector.extract_strided_slice %83 {offsets = [12, 0], sizes = [2, 16], strides = [1, 1]} : vector<32x16xbf16> to vector<2x16xbf16>
      %c0_68 = arith.constant 0 : index
      %c96 = arith.constant 96 : index
      %99 = vector.load %arg11[%c0_68, %c96] : memref<8x256xbf16, #tpu.memory_space<vmem>>, vector<2x16xbf16>
      tpu.vector_store %arg11[%c0_68, %c96], %98 {strides = array<i32>} : memref<8x256xbf16, #tpu.memory_space<vmem>>, vector<2x16xbf16>,
      %100 = vector.extract_strided_slice %83 {offsets = [14, 0], sizes = [2, 16], strides = [1, 1]} : vector<32x16xbf16> to vector<2x16xbf16>
      %c0_69 = arith.constant 0 : index
      %c112 = arith.constant 112 : index
      %101 = vector.load %arg11[%c0_69, %c112] : memref<8x256xbf16, #tpu.memory_space<vmem>>, vector<2x16xbf16>
      tpu.vector_store %arg11[%c0_69, %c112], %100 {strides = array<i32>} : memref<8x256xbf16, #tpu.memory_space<vmem>>, vector<2x16xbf16>,
      %102 = vector.extract_strided_slice %83 {offsets = [16, 0], sizes = [2, 16], strides = [1, 1]} : vector<32x16xbf16> to vector<2x16xbf16>
      %c0_70 = arith.constant 0 : index
      %c128 = arith.constant 128 : index
      %103 = vector.load %arg11[%c0_70, %c128] : memref<8x256xbf16, #tpu.memory_space<vmem>>, vector<2x16xbf16>
      tpu.vector_store %arg11[%c0_70, %c128], %102 {strides = array<i32>} : memref<8x256xbf16, #tpu.memory_space<vmem>>, vector<2x16xbf16>,
      %104 = vector.extract_strided_slice %83 {offsets = [18, 0], sizes = [2, 16], strides = [1, 1]} : vector<32x16xbf16> to vector<2x16xbf16>
      %c0_71 = arith.constant 0 : index
      %c144 = arith.constant 144 : index
      %105 = vector.load %arg11[%c0_71, %c144] : memref<8x256xbf16, #tpu.memory_space<vmem>>, vector<2x16xbf16>
      tpu.vector_store %arg11[%c0_71, %c144], %104 {strides = array<i32>} : memref<8x256xbf16, #tpu.memory_space<vmem>>, vector<2x16xbf16>,
      %106 = vector.extract_strided_slice %83 {offsets = [20, 0], sizes = [2, 16], strides = [1, 1]} : vector<32x16xbf16> to vector<2x16xbf16>
      %c0_72 = arith.constant 0 : index
      %c160 = arith.constant 160 : index
      %107 = vector.load %arg11[%c0_72, %c160] : memref<8x256xbf16, #tpu.memory_space<vmem>>, vector<2x16xbf16>
      tpu.vector_store %arg11[%c0_72, %c160], %106 {strides = array<i32>} : memref<8x256xbf16, #tpu.memory_space<vmem>>, vector<2x16xbf16>,
      %108 = vector.extract_strided_slice %83 {offsets = [22, 0], sizes = [2, 16], strides = [1, 1]} : vector<32x16xbf16> to vector<2x16xbf16>
      %c0_73 = arith.constant 0 : index
      %c176 = arith.constant 176 : index
      %109 = vector.load %arg11[%c0_73, %c176] : memref<8x256xbf16, #tpu.memory_space<vmem>>, vector<2x16xbf16>
      tpu.vector_store %arg11[%c0_73, %c176], %108 {strides = array<i32>} : memref<8x256xbf16, #tpu.memory_space<vmem>>, vector<2x16xbf16>,
      %110 = vector.extract_strided_slice %83 {offsets = [24, 0], sizes = [2, 16], strides = [1, 1]} : vector<32x16xbf16> to vector<2x16xbf16>
      %c0_74 = arith.constant 0 : index
      %c192 = arith.constant 192 : index
      %111 = vector.load %arg11[%c0_74, %c192] : memref<8x256xbf16, #tpu.memory_space<vmem>>, vector<2x16xbf16>
      tpu.vector_store %arg11[%c0_74, %c192], %110 {strides = array<i32>} : memref<8x256xbf16, #tpu.memory_space<vmem>>, vector<2x16xbf16>,
      %112 = vector.extract_strided_slice %83 {offsets = [26, 0], sizes = [2, 16], strides = [1, 1]} : vector<32x16xbf16> to vector<2x16xbf16>
      %c0_75 = arith.constant 0 : index
      %c208 = arith.constant 208 : index
      %113 = vector.load %arg11[%c0_75, %c208] : memref<8x256xbf16, #tpu.memory_space<vmem>>, vector<2x16xbf16>
      tpu.vector_store %arg11[%c0_75, %c208], %112 {strides = array<i32>} : memref<8x256xbf16, #tpu.memory_space<vmem>>, vector<2x16xbf16>,
      %114 = vector.extract_strided_slice %83 {offsets = [28, 0], sizes = [2, 16], strides = [1, 1]} : vector<32x16xbf16> to vector<2x16xbf16>
      %c0_76 = arith.constant 0 : index
      %c224 = arith.constant 224 : index
      %115 = vector.load %arg11[%c0_76, %c224] : memref<8x256xbf16, #tpu.memory_space<vmem>>, vector<2x16xbf16>
      tpu.vector_store %arg11[%c0_76, %c224], %114 {strides = array<i32>} : memref<8x256xbf16, #tpu.memory_space<vmem>>, vector<2x16xbf16>,
      %116 = vector.extract_strided_slice %83 {offsets = [30, 0], sizes = [2, 16], strides = [1, 1]} : vector<32x16xbf16> to vector<2x16xbf16>
      %c0_77 = arith.constant 0 : index
      %c240 = arith.constant 240 : index
      %117 = vector.load %arg11[%c0_77, %c240] : memref<8x256xbf16, #tpu.memory_space<vmem>>, vector<2x16xbf16>
      tpu.vector_store %arg11[%c0_77, %c240], %116 {strides = array<i32>} : memref<8x256xbf16, #tpu.memory_space<vmem>>, vector<2x16xbf16>,
    } else {
    }
    %c0 = arith.constant 0 : index
    %c0_1 = arith.constant 0 : index
    %3 = vector.load %arg11[%c0, %c0_1] : memref<8x256xbf16, #tpu.memory_space<vmem>>, vector<8x256xbf16>
    %c0_2 = arith.constant 0 : index
    %c0_3 = arith.constant 0 : index
    %4 = vector.load %arg6[%c0_2, %c0_3] : memref<256x512xbf16, #tpu.memory_space<vmem>>, vector<256x512xbf16>
    %cst = arith.constant dense<0.000000e+00> : vector<8x512xf32>
    %5 = tpu.matmul %3, %4, %cst {dimension_numbers = #tpu.dot_dimension_numbers<[1], [0], [0], [1], [0, 0, 1, 1], [], []>} : vector<8x256xbf16>, vector<256x512xbf16>, vector<8x512xf32> -> vector<8x512xf32>
    %c0_4 = arith.constant 0 : index
    %c0_5 = arith.constant 0 : index
    %6 = vector.load %arg7[%c0_4, %c0_5] : memref<1x512xf32, #tpu.memory_space<vmem>>, vector<1x512xf32>
    %7 = vector.broadcast %6 : vector<1x512xf32> to vector<8x512xf32>
    %8 = arith.addf %5, %7 : vector<8x512xf32>
    %cst_6 = arith.constant 0.000000e+00 : f32
    %9 = vector.broadcast %cst_6 : f32 to vector<8x512xf32>
    %10 = arith.maximumf %8, %9 : vector<8x512xf32>
    %11 = arith.truncf %10 : vector<8x512xf32> to vector<8x512xbf16>
    %c0_i32_7 = arith.constant 0 : i32
    %12 = arith.cmpi eq, %arg0, %c0_i32_7 : i32
    %13 = arith.extui %12 : i1 to i32
    %c0_i32_8 = arith.constant 0 : i32
    %14 = arith.cmpi ne, %13, %c0_i32_8 : i32
    scf.if %14 {
      %cst_17 = arith.constant 0.000000e+00 : f32
      %23 = vector.broadcast %cst_17 : f32 to vector<8x128xf32>
      %c0_18 = arith.constant 0 : index
      %c0_19 = arith.constant 0 : index
      %24 = vector.load %arg10[%c0_18, %c0_19] : memref<8x128xf32, #tpu.memory_space<vmem>>, vector<8x128xf32>
      tpu.vector_store %arg10[%c0_18, %c0_19], %23 {strides = array<i32>} : memref<8x128xf32, #tpu.memory_space<vmem>>, vector<8x128xf32>,
    } else {
    }
    %c0_9 = arith.constant 0 : index
    %c0_10 = arith.constant 0 : index
    %15 = vector.load %arg10[%c0_9, %c0_10] : memref<8x128xf32, #tpu.memory_space<vmem>>, vector<8x128xf32>
    %c0_11 = arith.constant 0 : index
    %c0_12 = arith.constant 0 : index
    %16 = vector.load %arg8[%c0_11, %c0_12] : memref<512x128xbf16, #tpu.memory_space<vmem>>, vector<512x128xbf16>
    %cst_13 = arith.constant dense<0.000000e+00> : vector<8x128xf32>
    %17 = tpu.matmul %11, %16, %cst_13 {dimension_numbers = #tpu.dot_dimension_numbers<[1], [0], [0], [1], [0, 0, 1, 1], [], []>} : vector<8x512xbf16>, vector<512x128xbf16>, vector<8x128xf32> -> vector<8x128xf32>
    %18 = arith.addf %15, %17 : vector<8x128xf32>
    %c0_14 = arith.constant 0 : index
    %c0_15 = arith.constant 0 : index
    %19 = vector.load %arg10[%c0_14, %c0_15] : memref<8x128xf32, #tpu.memory_space<vmem>>, vector<8x128xf32>
    tpu.vector_store %arg10[%c0_14, %c0_15], %18 {strides = array<i32>} : memref<8x128xf32, #tpu.memory_space<vmem>>, vector<8x128xf32>,
    %c3_i32 = arith.constant 3 : i32
    %20 = arith.cmpi eq, %arg0, %c3_i32 : i32
    %21 = arith.extui %20 : i1 to i32
    %c0_i32_16 = arith.constant 0 : i32
    %22 = arith.cmpi ne, %21, %c0_i32_16 : i32
    scf.if %22 {
      %c0_17 = arith.constant 0 : index
      %c0_18 = arith.constant 0 : index
      %23 = vector.load %arg10[%c0_17, %c0_18] : memref<8x128xf32, #tpu.memory_space<vmem>>, vector<8x128xf32>
      %c0_19 = arith.constant 0 : index
      %c0_20 = arith.constant 0 : index
      %24 = vector.load %arg9[%c0_19, %c0_20] : memref<1x128xf32, #tpu.memory_space<vmem>>, vector<1x128xf32>
      %25 = vector.broadcast %24 : vector<1x128xf32> to vector<8x128xf32>
      %26 = arith.addf %23, %25 : vector<8x128xf32>
      %c0_21 = arith.constant 0 : index
      %c0_22 = arith.constant 0 : index
      %27 = vector.load %arg10[%c0_21, %c0_22] : memref<8x128xf32, #tpu.memory_space<vmem>>, vector<8x128xf32>
      tpu.vector_store %arg10[%c0_21, %c0_22], %26 {strides = array<i32>} : memref<8x128xf32, #tpu.memory_space<vmem>>, vector<8x128xf32>,
    } else {
    }
    return
  }
  func.func @transform_0(%arg0: i32) -> (i32, i32) {
    %c0_i32 = arith.constant 0 : i32
    %c0_i32_0 = arith.constant 0 : i32
    %c0_i32_1 = arith.constant 0 : i32
    return %c0_i32, %c0_i32_0 : i32, i32
  }
  func.func @transform_1(%arg0: i32) -> (i32, i32) {
    %c0_i32 = arith.constant 0 : i32
    %c0_i32_0 = arith.constant 0 : i32
    %c0_i32_1 = arith.constant 0 : i32
    return %c0_i32, %c0_i32_0 : i32, i32
  }
  func.func @transform_2(%arg0: i32) -> (i32, i32) {
    %c0_i32 = arith.constant 0 : i32
    %c0_i32_0 = arith.constant 0 : i32
    %c0_i32_1 = arith.constant 0 : i32
    return %c0_i32, %c0_i32_0 : i32, i32
  }
  func.func @transform_3(%arg0: i32) -> (i32, i32, i32) {
    %c0_i32 = arith.constant 0 : i32
    %c0_i32_0 = arith.constant 0 : i32
    %c0_i32_1 = arith.constant 0 : i32
    %c0_i32_2 = arith.constant 0 : i32
    return %c0_i32, %c0_i32_0, %c0_i32_1 : i32, i32, i32
  }
  func.func @transform_4(%arg0: i32) -> (i32, i32) {
    %c0_i32 = arith.constant 0 : i32
    %c0_i32_0 = arith.constant 0 : i32
    %c0_i32_1 = arith.constant 0 : i32
    return %c0_i32, %c0_i32_0 : i32, i32
  }
  func.func @transform_5(%arg0: i32) -> (i32, i32) {
    %c0_i32 = arith.constant 0 : i32
    %c0_i32_0 = arith.constant 0 : i32
    return %c0_i32, %arg0 : i32, i32
  }
  func.func @transform_6(%arg0: i32) -> (i32, i32) {
    %c0_i32 = arith.constant 0 : i32
    %c0_i32_0 = arith.constant 0 : i32
    return %c0_i32, %arg0 : i32, i32
  }
  func.func @transform_7(%arg0: i32) -> (i32, i32) {
    %c0_i32 = arith.constant 0 : i32
    %c0_i32_0 = arith.constant 0 : i32
    return %arg0, %c0_i32 : i32, i32
  }
  func.func @transform_8(%arg0: i32) -> (i32, i32) {
    %c0_i32 = arith.constant 0 : i32
    %c0_i32_0 = arith.constant 0 : i32
    %c0_i32_1 = arith.constant 0 : i32
    return %c0_i32, %c0_i32_0 : i32, i32
  }
  func.func @transform_9(%arg0: i32) -> (i32, i32) {
    %c0_i32 = arith.constant 0 : i32
    %c0_i32_0 = arith.constant 0 : i32
    %c0_i32_1 = arith.constant 0 : i32
    return %c0_i32, %c0_i32_0 : i32, i32
  }
}

</mosaic_0001>

<llo_original>
// kernel: pretrain_classifier_forward.1
$region0: #{pretrain_classifier_forward.1}
  #allocation0 [shape = 'u32[]', space=smem, size = 0x4, offset = 0x4, fixed_abs, tag = 'smem constant byte address 0x4 - core index']
  #allocation1 [shape = 'u32[144,128]{1,0:T(1,128)}', space=vmem, size = 0x12000, scoped, tag = 'internal scratch']
  #allocation2 [shape = 'bf16[8,256]{1,0:T(8,128)(2,1)}', space=vmem, size = 0x1000, scoped, tag = 'scratch operand']
  %s0 = inlined_call_operand.vmem [shape: bf16[128,32], index: 0, kind: input, shape index: {}]
  %s1 = inlined_call_operand.vmem [shape: bf16[32,8], index: 1, kind: input, shape index: {}]
  %s2 = inlined_call_operand.vmem [shape: bf16[288,128], index: 2, kind: input, shape index: {}]
  %s3 = inlined_call_operand.vmem [shape: bf16[9,8,16], index: 3, kind: input, shape index: {}]
  %s4 = inlined_call_operand.vmem [shape: f32[1,16], index: 4, kind: input, shape index: {}]
  %s5 = inlined_call_operand.hbm [shape: bf16[256,2048], index: 5, kind: input, shape index: {}]
  %s6 = inlined_call_operand.vmem [shape: f32[1,2048], index: 6, kind: input, shape index: {}]
  %s7 = inlined_call_operand.vmem [shape: bf16[2048,128], index: 7, kind: input, shape index: {}]
  %s8 = inlined_call_operand.vmem [shape: f32[1,128], index: 8, kind: input, shape index: {}]
  %s9 = inlined_call_operand.vmem [shape: f32[8,128], index: 9, kind: output, shape index: {}]
  %s10 = sld [smem:[#allocation0]]
  $region85: #{pretrain_classifier_forward.1} parent=0
    _
  %s12 = ssub.s32 1, %s10
  %s13 = scalar_select 0, %s12, %s10
  $region1: #{pretrain_classifier_forward.1} parent=0
    #allocation3 [shape = 'u8[524288]{0}', space=vmem, size = 0x80000, scoped, tag = 'input window, operand 5']
    #allocation4 [shape = 's32[2]{0}', space=sflag, size = 0x8, scoped, tag = 'scoped memory for pretrain_classifier_forward.1']
    %14 = vsyncpa [#allocation4], 0
    %s15 = scalar_lea.sflag [#allocation4], 1
    %16 = vsyncpa %s15, 0
    loop: start=0, step=1, limit=6
    $region2: #{pretrain_classifier_forward.1} parent=1 // loop_pre_header
      _
    $region3: #{pretrain_classifier_forward.1} parent=1 // loop_header
      %s18 = sphi 0, %s22
      %p19 = scmp.ge.s32.totalorder %s18, 6
      %s26 = sphi 0, %s26
      %s28 = sphi 0, %s26
      %s29 = sphi 0, %s28
      %s43 = sphi 0, %s29
      %s47 = sphi 0, %s47
      %s49 = sphi 0, %s47
      %s50 = sphi 0, %s49
      %s64 = sphi 0, %s50
      %s68 = sphi 0, %s68
      %s70 = sphi 0, %s68
      %s71 = sphi 0, %s70
      %s85 = sphi 0, %s71
      %s89 = sphi 0, %s89
      %s91 = sphi 0, %s89
      %s92 = sphi 0, %s91
      %s106 = sphi 0, %s92
      %s110 = sphi 0, %s110
      %s112 = sphi 0, %s110
      %s113 = sphi 0, %s112
      %s127 = sphi 0, %s113
      %s133 = sphi 0, %s135
      %s136 = sphi 0, %s133
      %s137 = sphi 0, %s136
      %s153 = sphi 0, %s137
      %s159 = sphi 0, %s161
      %s162 = sphi 0, %s159
      %s163 = sphi 0, %s162
      %s179 = sphi 0, %s163
      %s185 = sphi 0, %s187
      %s188 = sphi 0, %s185
      %s189 = sphi 0, %s188
      %s205 = sphi 0, %s189
      %s209 = sphi 0, %s209
      %s211 = sphi 0, %s209
      %s212 = sphi 0, %s211
      %s226 = sphi 0, %s212
      %s230 = sphi 0, %s230
      %s232 = sphi 0, %s230
      %s233 = sphi 0, %s232
      %s247 = sphi 0, %s233
    $region4: #{pretrain_classifier_forward.1} parent=1 // loop_header_branch
      %21 = sbr.rel (%p19) target = $region8
    $region5: #{pretrain_classifier_forward.1} parent=1 // loop_body
      %s23 = ssub.s32 %s18, 1
      %s24 = ssub.s32 %s18, 2
      %s25 = sadd.s32 %s18, 1
      %s27 = sadd.s32 %s26, 1
      %p30 = scmp.eq.s32.totalorder %s18, 3
      %p31 = scmp.ne.s32.totalorder %s26, %s28
      %p32 = scmp.eq.s32.totalorder %s18, 0
      %p33 = por %p31, %p32
      %p34 = scmp.ne.s32.totalorder %s26, %s28
      %p35 = scmp.eq.s32.totalorder %s23, 3
      %p36 = por %p34, %p35
      %p37 = scmp.ne.s32.totalorder %s28, %s29
      %p38 = scmp.eq.s32.totalorder %s23, 0
      %p39 = por %p37, %p38
      %p40 = scmp.ne.s32.totalorder %s28, %s29
      %p41 = scmp.eq.s32.totalorder %s24, 3
      %p42 = por %p40, %p41
      %p44 = scmp.ne.s32.totalorder %s29, %s43
      %p45 = scmp.eq.s32.totalorder %s24, 0
      %p46 = por %p44, %p45
      %s48 = sadd.s32 %s47, 1
      %p51 = scmp.eq.s32.totalorder %s18, 3
      %p52 = scmp.ne.s32.totalorder %s47, %s49
      %p53 = scmp.eq.s32.totalorder %s18, 0
      %p54 = por %p52, %p53
      %p55 = scmp.ne.s32.totalorder %s47, %s49
      %p56 = scmp.eq.s32.totalorder %s23, 3
      %p57 = por %p55, %p56
      %p58 = scmp.ne.s32.totalorder %s49, %s50
      %p59 = scmp.eq.s32.totalorder %s23, 0
      %p60 = por %p58, %p59
      %p61 = scmp.ne.s32.totalorder %s49, %s50
      %p62 = scmp.eq.s32.totalorder %s24, 3
      %p63 = por %p61, %p62
      %p65 = scmp.ne.s32.totalorder %s50, %s64
      %p66 = scmp.eq.s32.totalorder %s24, 0
      %p67 = por %p65, %p66
      %s69 = sadd.s32 %s68, 1
      %p72 = scmp.eq.s32.totalorder %s18, 3
      %p73 = scmp.ne.s32.totalorder %s68, %s70
      %p74 = scmp.eq.s32.totalorder %s18, 0
      %p75 = por %p73, %p74
      %p76 = scmp.ne.s32.totalorder %s68, %s70
      %p77 = scmp.eq.s32.totalorder %s23, 3
      %p78 = por %p76, %p77
      %p79 = scmp.ne.s32.totalorder %s70, %s71
      %p80 = scmp.eq.s32.totalorder %s23, 0
      %p81 = por %p79, %p80
      %p82 = scmp.ne.s32.totalorder %s70, %s71
      %p83 = scmp.eq.s32.totalorder %s24, 3
      %p84 = por %p82, %p83
      %p86 = scmp.ne.s32.totalorder %s71, %s85
      %p87 = scmp.eq.s32.totalorder %s24, 0
      %p88 = por %p86, %p87
      %s90 = sadd.s32 %s89, 1
      %p93 = scmp.eq.s32.totalorder %s18, 3
      %p94 = scmp.ne.s32.totalorder %s89, %s91
      %p95 = scmp.eq.s32.totalorder %s18, 0
      %p96 = por %p94, %p95
      %p97 = scmp.ne.s32.totalorder %s89, %s91
      %p98 = scmp.eq.s32.totalorder %s23, 3
      %p99 = por %p97, %p98
      %p100 = scmp.ne.s32.totalorder %s91, %s92
      %p101 = scmp.eq.s32.totalorder %s23, 0
      %p102 = por %p100, %p101
      %p103 = scmp.ne.s32.totalorder %s91, %s92
      %p104 = scmp.eq.s32.totalorder %s24, 3
      %p105 = por %p103, %p104
      %p107 = scmp.ne.s32.totalorder %s92, %s106
      %p108 = scmp.eq.s32.totalorder %s24, 0
      %p109 = por %p107, %p108
      %s111 = sadd.s32 %s110, 1
      %p114 = scmp.eq.s32.totalorder %s18, 3
      %p115 = scmp.ne.s32.totalorder %s110, %s112
      %p116 = scmp.eq.s32.totalorder %s18, 0
      %p117 = por %p115, %p116
      %p118 = scmp.ne.s32.totalorder %s110, %s112
      %p119 = scmp.eq.s32.totalorder %s23, 3
      %p120 = por %p118, %p119
      %p121 = scmp.ne.s32.totalorder %s112, %s113
      %p122 = scmp.eq.s32.totalorder %s23, 0
      %p123 = por %p121, %p122
      %p124 = scmp.ne.s32.totalorder %s112, %s113
      %p125 = scmp.eq.s32.totalorder %s24, 3
      %p126 = por %p124, %p125
      %p128 = scmp.ne.s32.totalorder %s113, %s127
      %p129 = scmp.eq.s32.totalorder %s24, 0
      %p130 = por %p128, %p129
      %s131 = ssub.s32 %s18, %s25
      %p132 = scmp.eq.s32.totalorder %s131, 0
      %s134 = sadd.s32 %s133, 1
      %s135 = scalar_select %p132, %s133, %s134
      %p138 = pneg %p132
      %p139 = scmp.eq.s32.totalorder %s18, 3
      %p140 = por %p138, %p139
      %p141 = scmp.ne.s32.totalorder %s133, %s136
      %p142 = scmp.eq.s32.totalorder %s18, 0
      %p143 = por %p141, %p142
      %p144 = scmp.ne.s32.totalorder %s133, %s136
      %p145 = scmp.eq.s32.totalorder %s23, 3
      %p146 = por %p144, %p145
      %p147 = scmp.ne.s32.totalorder %s136, %s137
      %p148 = scmp.eq.s32.totalorder %s23, 0
      %p149 = por %p147, %p148
      %p150 = scmp.ne.s32.totalorder %s136, %s137
      %p151 = scmp.eq.s32.totalorder %s24, 3
      %p152 = por %p150, %p151
      %p154 = scmp.ne.s32.totalorder %s137, %s153
      %p155 = scmp.eq.s32.totalorder %s24, 0
      %p156 = por %p154, %p155
      %s157 = ssub.s32 %s18, %s25
      %p158 = scmp.eq.s32.totalorder %s157, 0
      %s160 = sadd.s32 %s159, 1
      %s161 = scalar_select %p158, %s159, %s160
      %p164 = pneg %p158
      %p165 = scmp.eq.s32.totalorder %s18, 3
      %p166 = por %p164, %p165
      %p167 = scmp.ne.s32.totalorder %s159, %s162
      %p168 = scmp.eq.s32.totalorder %s18, 0
      %p169 = por %p167, %p168
      %p170 = scmp.ne.s32.totalorder %s159, %s162
      %p171 = scmp.eq.s32.totalorder %s23, 3
      %p172 = por %p170, %p171
      %p173 = scmp.ne.s32.totalorder %s162, %s163
      %p174 = scmp.eq.s32.totalorder %s23, 0
      %p175 = por %p173, %p174
      %p176 = scmp.ne.s32.totalorder %s162, %s163
      %p177 = scmp.eq.s32.totalorder %s24, 3
      %p178 = por %p176, %p177
      %p180 = scmp.ne.s32.totalorder %s163, %s179
      %p181 = scmp.eq.s32.totalorder %s24, 0
      %p182 = por %p180, %p181
      %s183 = ssub.s32 %s18, %s25
      %p184 = scmp.eq.s32.totalorder %s183, 0
      %s186 = sadd.s32 %s185, 1
      %s187 = scalar_select %p184, %s185, %s186
      %p190 = pneg %p184
      %p191 = scmp.eq.s32.totalorder %s18, 3
      %p192 = por %p190, %p191
      %p193 = scmp.ne.s32.totalorder %s185, %s188
      %p194 = scmp.eq.s32.totalorder %s18, 0
      %p195 = por %p193, %p194
      %p196 = scmp.ne.s32.totalorder %s185, %s188
      %p197 = scmp.eq.s32.totalorder %s23, 3
      %p198 = por %p196, %p197
      %p199 = scmp.ne.s32.totalorder %s188, %s189
      %p200 = scmp.eq.s32.totalorder %s23, 0
      %p201 = por %p199, %p200
      %p202 = scmp.ne.s32.totalorder %s188, %s189
      %p203 = scmp.eq.s32.totalorder %s24, 3
      %p204 = por %p202, %p203
      %p206 = scmp.ne.s32.totalorder %s189, %s205
      %p207 = scmp.eq.s32.totalorder %s24, 0
      %p208 = por %p206, %p207
      %s210 = sadd.s32 %s209, 1
      %p213 = scmp.eq.s32.totalorder %s18, 3
      %p214 = scmp.ne.s32.totalorder %s209, %s211
      %p215 = scmp.eq.s32.totalorder %s18, 0
      %p216 = por %p214, %p215
      %p217 = scmp.ne.s32.totalorder %s209, %s211
      %p218 = scmp.eq.s32.totalorder %s23, 3
      %p219 = por %p217, %p218
      %p220 = scmp.ne.s32.totalorder %s211, %s212
      %p221 = scmp.eq.s32.totalorder %s23, 0
      %p222 = por %p220, %p221
      %p223 = scmp.ne.s32.totalorder %s211, %s212
      %p224 = scmp.eq.s32.totalorder %s24, 3
      %p225 = por %p223, %p224
      %p227 = scmp.ne.s32.totalorder %s212, %s226
      %p228 = scmp.eq.s32.totalorder %s24, 0
      %p229 = por %p227, %p228
      %s231 = sadd.s32 %s230, 1
      %p234 = scmp.eq.s32.totalorder %s18, 3
      %p235 = scmp.ne.s32.totalorder %s230, %s232
      %p236 = scmp.eq.s32.totalorder %s18, 0
      %p237 = por %p235, %p236
      %p238 = scmp.ne.s32.totalorder %s230, %s232
      %p239 = scmp.eq.s32.totalorder %s23, 3
      %p240 = por %p238, %p239
      %p241 = scmp.ne.s32.totalorder %s232, %s233
      %p242 = scmp.eq.s32.totalorder %s23, 0
      %p243 = por %p241, %p242
      %p244 = scmp.ne.s32.totalorder %s232, %s233
      %p245 = scmp.eq.s32.totalorder %s24, 3
      %p246 = por %p244, %p245
      %p248 = scmp.ne.s32.totalorder %s233, %s247
      %p249 = scmp.eq.s32.totalorder %s24, 0
      %p250 = por %p248, %p249
      %p251 = scmp.le.s32.totalorder 1, %s18
      %p252 = scmp.lt.s32.totalorder %s18, 5
      %p253 = pnand %p251, %p252
      %p254 = pneg %p253
      // Predicated region
      $region9: #{pretrain_classifier_forward.1} parent=5 // pred_check
        _
      $region10: #{pretrain_classifier_forward.1} parent=5 // pred_check_branch
        %256 = sbr.rel (%p253) target = $region12
      $region11: #{pretrain_classifier_forward.1} parent=5 // pred_region
        %s257 = ssub.s32 %s18, 1
        // Predicated region
        $region13: #{pretrain_classifier_forward.1} parent=11 // pred_check
          %p258 = pneg %p39
        $region14: #{pretrain_classifier_forward.1} parent=11 // pred_check_branch
          %260 = sbr.rel (%p258) target = $region16
        $region15: #{pretrain_classifier_forward.1} parent=11 // pred_region
          _
        $region16: #{pretrain_classifier_forward.1} parent=11 // pred_fallthru
          _
        // Predicated region
        $region17: #{pretrain_classifier_forward.1} parent=11 // pred_check
          %p261 = pneg %p60
        $region18: #{pretrain_classifier_forward.1} parent=11 // pred_check_branch
          %263 = sbr.rel (%p261) target = $region20
        $region19: #{pretrain_classifier_forward.1} parent=11 // pred_region
          _
        $region20: #{pretrain_classifier_forward.1} parent=11 // pred_fallthru
          _
        // Predicated region
        $region21: #{pretrain_classifier_forward.1} parent=11 // pred_check
          %p264 = pneg %p81
        $region22: #{pretrain_classifier_forward.1} parent=11 // pred_check_branch
          %266 = sbr.rel (%p264) target = $region24
        $region23: #{pretrain_classifier_forward.1} parent=11 // pred_region
          _
        $region24: #{pretrain_classifier_forward.1} parent=11 // pred_fallthru
          _
        // Predicated region
        $region25: #{pretrain_classifier_forward.1} parent=11 // pred_check
          %p267 = pneg %p102
        $region26: #{pretrain_classifier_forward.1} parent=11 // pred_check_branch
          %269 = sbr.rel (%p267) target = $region28
        $region27: #{pretrain_classifier_forward.1} parent=11 // pred_region
          _
        $region28: #{pretrain_classifier_forward.1} parent=11 // pred_fallthru
          _
        // Predicated region
        $region29: #{pretrain_classifier_forward.1} parent=11 // pred_check
          %p270 = pneg %p123
        $region30: #{pretrain_classifier_forward.1} parent=11 // pred_check_branch
          %272 = sbr.rel (%p270) target = $region32
        $region31: #{pretrain_classifier_forward.1} parent=11 // pred_region
          _
        $region32: #{pretrain_classifier_forward.1} parent=11 // pred_fallthru
          _
        // Predicated region
        $region33: #{pretrain_classifier_forward.1} parent=11 // pred_check
          %p273 = pneg %p222
        $region34: #{pretrain_classifier_forward.1} parent=11 // pred_check_branch
          %275 = sbr.rel (%p273) target = $region36
        $region35: #{pretrain_classifier_forward.1} parent=11 // pred_region
          _
        $region36: #{pretrain_classifier_forward.1} parent=11 // pred_fallthru
          _
      $region12: #{pretrain_classifier_forward.1} parent=5 // pred_fallthru
        _
      %p276 = scmp.lt.s32.totalorder %s18, 4
      // Predicated region
      $region37: #{pretrain_classifier_forward.1} parent=5 // pred_check
        %p277 = pneg %p276
      $region38: #{pretrain_classifier_forward.1} parent=5 // pred_check_branch
        %279 = sbr.rel (%p277) target = $region40
      $region39: #{pretrain_classifier_forward.1} parent=5 // pred_region
        // Predicated region
        $region41: #{pretrain_classifier_forward.1} parent=39 // pred_check
          %p280 = pneg %p143
        $region42: #{pretrain_classifier_forward.1} parent=39 // pred_check_branch
          %282 = sbr.rel (%p280) target = $region44
        $region43: #{pretrain_classifier_forward.1} parent=39 // pred_region
          %s283 = sand.u32 %s133, 1
          %s284 = scalar_lea.sflag [#allocation4], %s283
          %s285 = sand.u32 %s133, 1
          %s286 = smul.addr %s285, 512
          %s287 = scalar_lea.vmem [#allocation3], %s286
          %s288 = smul.u32 4, %s18
          %s290 = ssub.s32 8192, 8192
          %291 = vsyncadd %s284, %s290
          %s292 = smul.addr %s288, 64
          %s293 = scalar_lea.hbm %s5, %s292
          %s294 = sshll.u32 %s287, 4
          %s295 = int_to_ptr.vmem [resolvable:$true] %s294
          %300 = dma.hbm_to_vmem [thread:$0]  %s293, 8192, %s295, %s284, 1024, 256, 16
        $region44: #{pretrain_classifier_forward.1} parent=39 // pred_fallthru
          _
        // Predicated region
        $region45: #{pretrain_classifier_forward.1} parent=39 // pred_check
          %p301 = pneg %p169
        $region46: #{pretrain_classifier_forward.1} parent=39 // pred_check_branch
          %303 = sbr.rel (%p301) target = $region48
        $region47: #{pretrain_classifier_forward.1} parent=39 // pred_region
          %s304 = smul.u32 4, %s18
          %p305 = scmp.lt.s32.totalorder %s304, 15
          %s306 = scalar_select %p305, %s304, 15
          %s307 = scalar_lea.vmem %s6, %s306
          %s308 = smul.u32 4, %s18
        $region48: #{pretrain_classifier_forward.1} parent=39 // pred_fallthru
          _
        // Predicated region
        $region49: #{pretrain_classifier_forward.1} parent=39 // pred_check
          %p309 = pneg %p195
        $region50: #{pretrain_classifier_forward.1} parent=39 // pred_check_branch
          %311 = sbr.rel (%p309) target = $region52
        $region51: #{pretrain_classifier_forward.1} parent=39 // pred_region
          %s312 = smul.u32 64, %s18
          %p313 = scmp.lt.s32.totalorder %s312, 255
          %s314 = scalar_select %p313, %s312, 255
          %s315 = smul.addr %s314, 4
          %s316 = scalar_lea.vmem %s7, %s315
          %s317 = smul.u32 64, %s18
        $region52: #{pretrain_classifier_forward.1} parent=39 // pred_fallthru
          _
      $region40: #{pretrain_classifier_forward.1} parent=5 // pred_fallthru
        _
      %p318 = scmp.le.s32.totalorder 1, %s18
      %p319 = scmp.lt.s32.totalorder %s18, 5
      %p320 = pnand %p318, %p319
      %p321 = pneg %p320
      // Predicated region
      $region53: #{pretrain_classifier_forward.1} parent=5 // pred_check
        _
      $region54: #{pretrain_classifier_forward.1} parent=5 // pred_check_branch
        %323 = sbr.rel (%p320) target = $region56
      $region55: #{pretrain_classifier_forward.1} parent=5 // pred_region
        %s324 = ssub.s32 %s18, 1
        %s325 = sand.u32 %s136, 1
        %s326 = scalar_lea.sflag [#allocation4], %s325
        %s327 = sand.u32 %s136, 1
        %s328 = smul.addr %s327, 512
        %s329 = scalar_lea.vmem [#allocation3], %s328
        // Predicated region
        $region57: #{pretrain_classifier_forward.1} parent=55 // pred_check
          %p330 = pneg %p149
        $region58: #{pretrain_classifier_forward.1} parent=55 // pred_check_branch
          %332 = sbr.rel (%p330) target = $region60
        $region59: #{pretrain_classifier_forward.1} parent=55 // pred_region
          %333 = dma.done %s326, 8192
        $region60: #{pretrain_classifier_forward.1} parent=55 // pred_fallthru
          _
        %p334 = pneg %p39
        %p335 = pneg %p36
        %p336 = pneg %p60
        %p337 = pneg %p57
        %p338 = pneg %p81
        %p339 = pneg %p78
        %p340 = pneg %p102
        %p341 = pneg %p99
        %p342 = pneg %p123
        %p343 = pneg %p120
        %s344 = sand.u32 %s136, 1
        %s345 = scalar_lea.sflag [#allocation4], %s344
        %s346 = sand.u32 %s136, 1
        %s347 = smul.addr %s346, 512
        %s348 = scalar_lea.vmem [#allocation3], %s347
        %p349 = pneg %p149
        %p350 = pneg %p146
        %s351 = smul.u32 4, %s23
        %p352 = scmp.lt.s32.totalorder %s351, 15
        %s353 = scalar_select %p352, %s351, 15
        %s354 = scalar_lea.vmem %s6, %s353
        %p355 = pneg %p175
        %p356 = pneg %p172
        %s357 = smul.u32 64, %s23
        %p358 = scmp.lt.s32.totalorder %s357, 255
        %s359 = scalar_select %p358, %s357, 255
        %s360 = smul.addr %s359, 4
        %s361 = scalar_lea.vmem %s7, %s360
        %p362 = pneg %p201
        %p363 = pneg %p198
        %p364 = pneg %p222
        %p365 = pneg %p219
        %p366 = pneg %p243
        %p367 = pneg %p240
        %s368 = smul.u32 4, %s23
        %s369 = smul.u32 4, %s23
        %p370 = scmp.lt.s32.totalorder %s369, 15
        %s371 = scalar_select %p370, %s369, 15
        %s372 = scalar_lea.vmem %s6, %s371
        %s373 = smul.u32 4, %s23
        %s374 = smul.u32 64, %s23
        %p375 = scmp.lt.s32.totalorder %s374, 255
        %s376 = scalar_select %p375, %s374, 255
        %s377 = smul.addr %s376, 4
        %s378 = scalar_lea.vmem %s7, %s377
        %s379 = smul.u32 64, %s23
        %p381 = scmp.eq.s32.totalorder %s23, 0
        // Predicated region
        $region61: #{pretrain_classifier_forward.1} parent=55 // pred_check
          %p382 = pneg %p381
        $region62: #{pretrain_classifier_forward.1} parent=55 // pred_check_branch
          %384 = sbr.rel (%p382) target = $region64
        $region63: #{pretrain_classifier_forward.1} parent=55 // pred_region
          %v385 = vld [vmem:[%s0] sm:$0xf]
          %v386 = vld [vmem:[%s0 + $0x4] sm:$0xf]
          %v387 = vld [vmem:[%s0 + $0x8] sm:$0xf]
          %v388 = vld [vmem:[%s0 + $0xc] sm:$0xf]
          %v389 = vld [vmem:[%s0 + $0x10] sm:$0xf]
          %v390 = vld [vmem:[%s0 + $0x14] sm:$0xf]
          %v391 = vld [vmem:[%s0 + $0x18] sm:$0xf]
          %v392 = vld [vmem:[%s0 + $0x1c] sm:$0xf]
          %v393 = vld [vmem:[%s0 + $0x20] sm:$0xf]
          %v394 = vld [vmem:[%s0 + $0x24] sm:$0xf]
          %v395 = vld [vmem:[%s0 + $0x28] sm:$0xf]
          %v396 = vld [vmem:[%s0 + $0x2c] sm:$0xf]
          %v397 = vld [vmem:[%s0 + $0x30] sm:$0xf]
          %v398 = vld [vmem:[%s0 + $0x34] sm:$0xf]
          %v399 = vld [vmem:[%s0 + $0x38] sm:$0xf]
          %v400 = vld [vmem:[%s0 + $0x3c] sm:$0xf]
          %v401 = vld [vmem:[%s1] sm:$0xf]
          %v402 = vld [vmem:[%s1 + $0x4] sm:$0xf]
          %v403 = vld [vmem:[%s1 + $0x8] sm:$0xf]
          %v404 = vld [vmem:[%s1 + $0xc] sm:$0xf]
          %v421 = vunpack.c.l.b16 %v385
          %v422 = vunpack.c.l.b16 %v386
          %v423 = vunpack.c.l.b16 %v387
          %v424 = vunpack.c.l.b16 %v388
          %v425 = vunpack.c.l.b16 %v389
          %v426 = vunpack.c.l.b16 %v390
          %v427 = vunpack.c.l.b16 %v391
          %v428 = vunpack.c.l.b16 %v392
          %v429 = vunpack.c.l.b16 %v393
          %v430 = vunpack.c.l.b16 %v394
          %v431 = vunpack.c.l.b16 %v395
          %v432 = vunpack.c.l.b16 %v396
          %v433 = vunpack.c.l.b16 %v397
          %v434 = vunpack.c.l.b16 %v398
          %v435 = vunpack.c.l.b16 %v399
          %v436 = vunpack.c.l.b16 %v400
          %v437 = vpack.c.b16 %v422, %v421
          %v438 = vpack.c.b16 %v424, %v423
          %v439 = vpack.c.b16 %v426, %v425
          %v440 = vpack.c.b16 %v428, %v427
          %v441 = vpack.c.b16 %v430, %v429
          %v442 = vpack.c.b16 %v432, %v431
          %v443 = vpack.c.b16 %v434, %v433
          %v444 = vpack.c.b16 %v436, %v435
          %v449 = vunpack.c.l.b16 %v401
          %v450 = vunpack.c.l.b16 %v402
          %v451 = vunpack.c.l.b16 %v403
          %v452 = vunpack.c.l.b16 %v404
          %v453 = vpack.c.b16 %v450, %v449
          %v454 = vpack.c.b16 %v452, %v451
          %vm457 = vcmask 261120
          %v459 = vsel %vm457, %v437, 0
          %v462 = vsel %vm457, %v438, 0
          %v465 = vsel %vm457, %v439, 0
          %v468 = vsel %vm457, %v440, 0
          %v471 = vsel %vm457, %v441, 0
          %v474 = vsel %vm457, %v442, 0
          %v477 = vsel %vm457, %v443, 0
          %v480 = vsel %vm457, %v444, 0
          %482 = vmatprep.subr.bf16.mxu0 0
          %483 = vmatpush1.bf16.msra.mxu0 0
          %484 = vmatprep.subr.bf16.mxu0 0
          %485 = vmatpush1.bf16.msra.mxu0 0
          %486 = vmatprep.subr.bf16.mxu0 0
          %487 = vmatpush1.bf16.msra.mxu0 0
          %488 = vmatprep.subr.bf16.mxu0 0
          %489 = vmatpush1.bf16.msra.mxu0 0
          %490 = vmatprep.subr.bf16.mxu0 0
          %491 = vmatpush1.bf16.msra.mxu0 0
          %492 = vmatprep.subr.bf16.mxu0 0
          %493 = vmatpush1.bf16.msra.mxu0 0
          %494 = vmatprep.subr.bf16.mxu0 0
          %495 = vmatpush1.bf16.msra.mxu0 %v454
          %496 = vmatprep.subr.bf16.mxu0 0
          %497 = vmatpush1.bf16.msra.mxu0 %v453
          %498 = vmatprep.subr.bf16.mxu0 0
          %499 = vmatpush2.bf16.msra.mxu0 0
          %500 = vmatprep.subr.bf16.mxu0 0
          %501 = vmatpush2.bf16.msra.mxu0 0
          %502 = vmatprep.subr.bf16.mxu0 0
          %503 = vmatpush2.bf16.msra.mxu0 0
          %504 = vmatprep.subr.bf16.mxu0 0
          %505 = vmatpush2.bf16.msra.mxu0 0
          %506 = vmatprep.subr.bf16.mxu0 0
          %507 = vmatpush2.bf16.msra.mxu0 0
          %508 = vmatprep.subr.bf16.mxu0 0
          %509 = vmatpush2.bf16.msra.mxu0 0
          %510 = vmatprep.subr.bf16.mxu0 0
          %511 = vmatpush2.bf16.msra.mxu0 0
          %512 = vmatprep.subr.bf16.mxu0 0
          %513 = vmatpush2.bf16.msra.mxu0 0
          %514 = vmatprep.mubr.bf16.mxu0 0
          %515 = vmatmul.mubr.bf16.gmra.mxu0 %v459
          %v516 = vpop.f32.mrf.mxu0
          %v517 = vadd.f32 0.0, %v516
          %v518 = vpop.f32.mrf.mxu0
          %v519 = vpop.f32.mrf.mxu0
          %v520 = vadd.f32 0.0, %v519
          %v521 = vpop.f32.mrf.mxu0
          %522 = vmatprep.mubr.bf16.mxu0 0
          %523 = vmatmul.mubr.bf16.gmra.mxu0 %v462
          %v524 = vpop.f32.mrf.mxu0
          %v525 = vadd.f32 0.0, %v524
          %v526 = vpop.f32.mrf.mxu0
          %v527 = vpop.f32.mrf.mxu0
          %v528 = vadd.f32 0.0, %v527
          %v529 = vpop.f32.mrf.mxu0
          %530 = vmatprep.mubr.bf16.mxu0 0
          %531 = vmatmul.mubr.bf16.gmra.mxu0 %v465
          %v532 = vpop.f32.mrf.mxu0
          %v533 = vadd.f32 0.0, %v532
          %v534 = vpop.f32.mrf.mxu0
          %v535 = vpop.f32.mrf.mxu0
          %v536 = vadd.f32 0.0, %v535
          %v537 = vpop.f32.mrf.mxu0
          %538 = vmatprep.mubr.bf16.mxu0 0
          %539 = vmatmul.mubr.bf16.gmra.mxu0 %v468
          %v540 = vpop.f32.mrf.mxu0
          %v541 = vadd.f32 0.0, %v540
          %v542 = vpop.f32.mrf.mxu0
          %v543 = vpop.f32.mrf.mxu0
          %v544 = vadd.f32 0.0, %v543
          %v545 = vpop.f32.mrf.mxu0
          %546 = vmatprep.mubr.bf16.mxu0 0
          %547 = vmatmul.mubr.bf16.gmra.mxu0 %v471
          %v548 = vpop.f32.mrf.mxu0
          %v549 = vadd.f32 0.0, %v548
          %v550 = vpop.f32.mrf.mxu0
          %v551 = vpop.f32.mrf.mxu0
          %v552 = vadd.f32 0.0, %v551
          %v553 = vpop.f32.mrf.mxu0
          %554 = vmatprep.mubr.bf16.mxu0 0
          %555 = vmatmul.mubr.bf16.gmra.mxu0 %v474
          %v556 = vpop.f32.mrf.mxu0
          %v557 = vadd.f32 0.0, %v556
          %v558 = vpop.f32.mrf.mxu0
          %v559 = vpop.f32.mrf.mxu0
          %v560 = vadd.f32 0.0, %v559
          %v561 = vpop.f32.mrf.mxu0
          %562 = vmatprep.mubr.bf16.mxu0 0
          %563 = vmatmul.mubr.bf16.gmra.mxu0 %v477
          %v564 = vpop.f32.mrf.mxu0
          %v565 = vadd.f32 0.0, %v564
          %v566 = vpop.f32.mrf.mxu0
          %v567 = vpop.f32.mrf.mxu0
          %v568 = vadd.f32 0.0, %v567
          %v569 = vpop.f32.mrf.mxu0
          %570 = vmatprep.mubr.bf16.mxu0 0
          %571 = vmatmul.mubr.bf16.gmra.mxu0 %v480
          %v572 = vpop.f32.mrf.mxu0
          %v573 = vadd.f32 0.0, %v572
          %v574 = vpop.f32.mrf.mxu0
          %v575 = vpop.f32.mrf.mxu0
          %v576 = vadd.f32 0.0, %v575
          %v577 = vpop.f32.mrf.mxu0
          %578 = vdwg.mxu0
          %v579 = vmax.f32 %v517, 0.0
          %v580 = vmax.f32 %v520, 0.0
          %v581 = vmax.f32 %v525, 0.0
          %v582 = vmax.f32 %v528, 0.0
          %v583 = vmax.f32 %v533, 0.0
          %v584 = vmax.f32 %v536, 0.0
          %v585 = vmax.f32 %v541, 0.0
          %v586 = vmax.f32 %v544, 0.0
          %v587 = vmax.f32 %v549, 0.0
          %v588 = vmax.f32 %v552, 0.0
          %v589 = vmax.f32 %v557, 0.0
          %v590 = vmax.f32 %v560, 0.0
          %v591 = vmax.f32 %v565, 0.0
          %v592 = vmax.f32 %v568, 0.0
          %v593 = vmax.f32 %v573, 0.0
          %v594 = vmax.f32 %v576, 0.0
          %v595 = vpack.c.bf16 %v580, %v579
          %v596 = vpack.c.bf16 %v582, %v581
          %v597 = vpack.c.bf16 %v584, %v583
          %v598 = vpack.c.bf16 %v586, %v585
          %v599 = vpack.c.bf16 %v588, %v587
          %v600 = vpack.c.bf16 %v590, %v589
          %v601 = vpack.c.bf16 %v592, %v591
          %v602 = vpack.c.bf16 %v594, %v593
          %v603 = vld [vmem:[%s2] sm:$0xf]
          %v604 = vld [vmem:[%s2 + $0x4] sm:$0xf]
          %v605 = vld [vmem:[%s2 + $0x8] sm:$0xf]
          %v606 = vld [vmem:[%s2 + $0xc] sm:$0xf]
          %v607 = vld [vmem:[%s2 + $0x10] sm:$0xf]
          %v608 = vld [vmem:[%s2 + $0x14] sm:$0xf]
          %v609 = vld [vmem:[%s2 + $0x18] sm:$0xf]
          %v610 = vld [vmem:[%s2 + $0x1c] sm:$0xf]
          %v611 = vld [vmem:[%s2 + $0x20] sm:$0xf]
          %v612 = vld [vmem:[%s2 + $0x24] sm:$0xf]
          %v613 = vld [vmem:[%s2 + $0x28] sm:$0xf]
          %v614 = vld [vmem:[%s2 + $0x2c] sm:$0xf]
          %v615 = vld [vmem:[%s2 + $0x30] sm:$0xf]
          %v616 = vld [vmem:[%s2 + $0x34] sm:$0xf]
          %v617 = vld [vmem:[%s2 + $0x38] sm:$0xf]
          %v618 = vld [vmem:[%s2 + $0x3c] sm:$0xf]
          %v619 = vld [vmem:[%s2 + $0x40] sm:$0xf]
          %v620 = vld [vmem:[%s2 + $0x44] sm:$0xf]
          %v621 = vld [vmem:[%s2 + $0x48] sm:$0xf]
          %v622 = vld [vmem:[%s2 + $0x4c] sm:$0xf]
          %v623 = vld [vmem:[%s2 + $0x50] sm:$0xf]
          %v624 = vld [vmem:[%s2 + $0x54] sm:$0xf]
          %v625 = vld [vmem:[%s2 + $0x58] sm:$0xf]
          %v626 = vld [vmem:[%s2 + $0x5c] sm:$0xf]
          %v627 = vld [vmem:[%s2 + $0x60] sm:$0xf]
          %v628 = vld [vmem:[%s2 + $0x64] sm:$0xf]
          %v629 = vld [vmem:[%s2 + $0x68] sm:$0xf]
          %v630 = vld [vmem:[%s2 + $0x6c] sm:$0xf]
          %v631 = vld [vmem:[%s2 + $0x70] sm:$0xf]
          %v632 = vld [vmem:[%s2 + $0x74] sm:$0xf]
          %v633 = vld [vmem:[%s2 + $0x78] sm:$0xf]
          %v634 = vld [vmem:[%s2 + $0x7c] sm:$0xf]
          %v635 = vld [vmem:[%s2 + $0x80] sm:$0xf]
          %v636 = vld [vmem:[%s2 + $0x84] sm:$0xf]
          %v637 = vld [vmem:[%s2 + $0x88] sm:$0xf]
          %v638 = vld [vmem:[%s2 + $0x8c] sm:$0xf]
          %v675 = vunpack.c.l.b16 %v603
          %v676 = vunpack.c.l.b16 %v604
          %v677 = vunpack.c.l.b16 %v605
          %v678 = vunpack.c.l.b16 %v606
          %v679 = vunpack.c.l.b16 %v607
          %v680 = vunpack.c.l.b16 %v608
          %v681 = vunpack.c.l.b16 %v609
          %v682 = vunpack.c.l.b16 %v610
          %v683 = vunpack.c.l.b16 %v611
          %v684 = vunpack.c.l.b16 %v612
          %v685 = vunpack.c.l.b16 %v613
          %v686 = vunpack.c.l.b16 %v614
          %v687 = vunpack.c.l.b16 %v615
          %v688 = vunpack.c.l.b16 %v616
          %v689 = vunpack.c.l.b16 %v617
          %v690 = vunpack.c.l.b16 %v618
          %v691 = vunpack.c.l.b16 %v619
          %v692 = vunpack.c.l.b16 %v620
          %v693 = vunpack.c.l.b16 %v621
          %v694 = vunpack.c.l.b16 %v622
          %v695 = vunpack.c.l.b16 %v623
          %v696 = vunpack.c.l.b16 %v624
          %v697 = vunpack.c.l.b16 %v625
          %v698 = vunpack.c.l.b16 %v626
          %v699 = vunpack.c.l.b16 %v627
          %v700 = vunpack.c.l.b16 %v628
          %v701 = vunpack.c.l.b16 %v629
          %v702 = vunpack.c.l.b16 %v630
          %v703 = vunpack.c.l.b16 %v631
          %v704 = vunpack.c.l.b16 %v632
          %v705 = vunpack.c.l.b16 %v633
          %v706 = vunpack.c.l.b16 %v634
          %v707 = vunpack.c.l.b16 %v635
          %v708 = vunpack.c.l.b16 %v636
          %v709 = vunpack.c.l.b16 %v637
          %v710 = vunpack.c.l.b16 %v638
          %v711 = vpack.c.b16 %v676, %v675
          %v712 = vpack.c.b16 %v678, %v677
          %v713 = vpack.c.b16 %v680, %v679
          %v714 = vpack.c.b16 %v682, %v681
          %v715 = vpack.c.b16 %v684, %v683
          %v716 = vpack.c.b16 %v686, %v685
          %v717 = vpack.c.b16 %v688, %v687
          %v718 = vpack.c.b16 %v690, %v689
          %v719 = vpack.c.b16 %v692, %v691
          %v720 = vpack.c.b16 %v694, %v693
          %v721 = vpack.c.b16 %v696, %v695
          %v722 = vpack.c.b16 %v698, %v697
          %v723 = vpack.c.b16 %v700, %v699
          %v724 = vpack.c.b16 %v702, %v701
          %v725 = vpack.c.b16 %v704, %v703
          %v726 = vpack.c.b16 %v706, %v705
          %v727 = vpack.c.b16 %v708, %v707
          %v728 = vpack.c.b16 %v710, %v709
          %747 = vmatprep.subr.bf16.mxu0 0
          %748 = vmatpush1.bf16.msra.mxu0 %v602
          %749 = vmatprep.subr.bf16.mxu0 0
          %750 = vmatpush1.bf16.msra.mxu0 %v601
          %751 = vmatprep.subr.bf16.mxu0 0
          %752 = vmatpush1.bf16.msra.mxu0 %v600
          %753 = vmatprep.subr.bf16.mxu0 0
          %754 = vmatpush1.bf16.msra.mxu0 %v599
          %755 = vmatprep.subr.bf16.mxu0 0
          %756 = vmatpush1.bf16.msra.mxu0 %v598
          %757 = vmatprep.subr.bf16.mxu0 0
          %758 = vmatpush1.bf16.msra.mxu0 %v597
          %759 = vmatprep.subr.bf16.mxu0 0
          %760 = vmatpush1.bf16.msra.mxu0 %v596
          %761 = vmatprep.subr.bf16.mxu0 0
          %762 = vmatpush1.bf16.msra.mxu0 %v595
          %763 = vmatprep.subr.bf16.mxu0 0
          %764 = vmatpush2.bf16.msra.mxu0 0
          %765 = vmatprep.subr.bf16.mxu0 0
          %766 = vmatpush2.bf16.msra.mxu0 0
          %767 = vmatprep.subr.bf16.mxu0 0
          %768 = vmatpush2.bf16.msra.mxu0 0
          %769 = vmatprep.subr.bf16.mxu0 0
          %770 = vmatpush2.bf16.msra.mxu0 0
          %771 = vmatprep.subr.bf16.mxu0 0
          %772 = vmatpush2.bf16.msra.mxu0 0
          %773 = vmatprep.subr.bf16.mxu0 0
          %774 = vmatpush2.bf16.msra.mxu0 0
          %775 = vmatprep.subr.bf16.mxu0 0
          %776 = vmatpush2.bf16.msra.mxu0 0
          %777 = vmatprep.subr.bf16.mxu0 0
          %778 = vmatpush2.bf16.msra.mxu0 0
          %779 = vmatprep.mubr.bf16.mxu0 0
          %780 = vmatmul.mubr.bf16.gmra.mxu0 %v711
          %v781 = vpop.f32.mrf.mxu0
          %v782 = vadd.f32 0.0, %v781
          %v783 = vpop.f32.mrf.mxu0
          %v784 = vpop.f32.mrf.mxu0
          %v785 = vadd.f32 0.0, %v784
          %v786 = vpop.f32.mrf.mxu0
          %787 = vmatprep.mubr.bf16.mxu0 0
          %788 = vmatmul.mubr.bf16.gmra.mxu0 %v712
          %v789 = vpop.f32.mrf.mxu0
          %v790 = vadd.f32 0.0, %v789
          %v791 = vpop.f32.mrf.mxu0
          %v792 = vpop.f32.mrf.mxu0
          %v793 = vadd.f32 0.0, %v792
          %v794 = vpop.f32.mrf.mxu0
          %795 = vmatprep.mubr.bf16.mxu0 0
          %796 = vmatmul.mubr.bf16.gmra.mxu0 %v713
          %v797 = vpop.f32.mrf.mxu0
          %v798 = vadd.f32 0.0, %v797
          %v799 = vpop.f32.mrf.mxu0
          %v800 = vpop.f32.mrf.mxu0
          %v801 = vadd.f32 0.0, %v800
          %v802 = vpop.f32.mrf.mxu0
          %803 = vmatprep.mubr.bf16.mxu0 0
          %804 = vmatmul.mubr.bf16.gmra.mxu0 %v714
          %v805 = vpop.f32.mrf.mxu0
          %v806 = vadd.f32 0.0, %v805
          %v807 = vpop.f32.mrf.mxu0
          %v808 = vpop.f32.mrf.mxu0
          %v809 = vadd.f32 0.0, %v808
          %v810 = vpop.f32.mrf.mxu0
          %811 = vmatprep.mubr.bf16.mxu0 0
          %812 = vmatmul.mubr.bf16.gmra.mxu0 %v715
          %v813 = vpop.f32.mrf.mxu0
          %v814 = vadd.f32 0.0, %v813
          %v815 = vpop.f32.mrf.mxu0
          %v816 = vpop.f32.mrf.mxu0
          %v817 = vadd.f32 0.0, %v816
          %v818 = vpop.f32.mrf.mxu0
          %819 = vmatprep.mubr.bf16.mxu0 0
          %820 = vmatmul.mubr.bf16.gmra.mxu0 %v716
          %v821 = vpop.f32.mrf.mxu0
          %v822 = vadd.f32 0.0, %v821
          %v823 = vpop.f32.mrf.mxu0
          %v824 = vpop.f32.mrf.mxu0
          %v825 = vadd.f32 0.0, %v824
          %v826 = vpop.f32.mrf.mxu0
          %827 = vmatprep.mubr.bf16.mxu0 0
          %828 = vmatmul.mubr.bf16.gmra.mxu0 %v717
          %v829 = vpop.f32.mrf.mxu0
          %v830 = vadd.f32 0.0, %v829
          %v831 = vpop.f32.mrf.mxu0
          %v832 = vpop.f32.mrf.mxu0
          %v833 = vadd.f32 0.0, %v832
          %v834 = vpop.f32.mrf.mxu0
          %835 = vmatprep.mubr.bf16.mxu0 0
          %836 = vmatmul.mubr.bf16.gmra.mxu0 %v718
          %v837 = vpop.f32.mrf.mxu0
          %v838 = vadd.f32 0.0, %v837
          %v839 = vpop.f32.mrf.mxu0
          %v840 = vpop.f32.mrf.mxu0
          %v841 = vadd.f32 0.0, %v840
          %v842 = vpop.f32.mrf.mxu0
          %843 = vmatprep.mubr.bf16.mxu0 0
          %844 = vmatmul.mubr.bf16.gmra.mxu0 %v719
          %v845 = vpop.f32.mrf.mxu0
          %v846 = vadd.f32 0.0, %v845
          %v847 = vpop.f32.mrf.mxu0
          %v848 = vpop.f32.mrf.mxu0
          %v849 = vadd.f32 0.0, %v848
          %v850 = vpop.f32.mrf.mxu0
          %851 = vmatprep.mubr.bf16.mxu0 0
          %852 = vmatmul.mubr.bf16.gmra.mxu0 %v720
          %v853 = vpop.f32.mrf.mxu0
          %v854 = vadd.f32 0.0, %v853
          %v855 = vpop.f32.mrf.mxu0
          %v856 = vpop.f32.mrf.mxu0
          %v857 = vadd.f32 0.0, %v856
          %v858 = vpop.f32.mrf.mxu0
          %859 = vmatprep.mubr.bf16.mxu0 0
          %860 = vmatmul.mubr.bf16.gmra.mxu0 %v721
          %v861 = vpop.f32.mrf.mxu0
          %v862 = vadd.f32 0.0, %v861
          %v863 = vpop.f32.mrf.mxu0
          %v864 = vpop.f32.mrf.mxu0
          %v865 = vadd.f32 0.0, %v864
          %v866 = vpop.f32.mrf.mxu0
          %867 = vmatprep.mubr.bf16.mxu0 0
          %868 = vmatmul.mubr.bf16.gmra.mxu0 %v722
          %v869 = vpop.f32.mrf.mxu0
          %v870 = vadd.f32 0.0, %v869
          %v871 = vpop.f32.mrf.mxu0
          %v872 = vpop.f32.mrf.mxu0
          %v873 = vadd.f32 0.0, %v872
          %v874 = vpop.f32.mrf.mxu0
          %875 = vmatprep.mubr.bf16.mxu0 0
          %876 = vmatmul.mubr.bf16.gmra.mxu0 %v723
          %v877 = vpop.f32.mrf.mxu0
          %v878 = vadd.f32 0.0, %v877
          %v879 = vpop.f32.mrf.mxu0
          %v880 = vpop.f32.mrf.mxu0
          %v881 = vadd.f32 0.0, %v880
          %v882 = vpop.f32.mrf.mxu0
          %883 = vmatprep.mubr.bf16.mxu0 0
          %884 = vmatmul.mubr.bf16.gmra.mxu0 %v724
          %v885 = vpop.f32.mrf.mxu0
          %v886 = vadd.f32 0.0, %v885
          %v887 = vpop.f32.mrf.mxu0
          %v888 = vpop.f32.mrf.mxu0
          %v889 = vadd.f32 0.0, %v888
          %v890 = vpop.f32.mrf.mxu0
          %891 = vmatprep.mubr.bf16.mxu0 0
          %892 = vmatmul.mubr.bf16.gmra.mxu0 %v725
          %v893 = vpop.f32.mrf.mxu0
          %v894 = vadd.f32 0.0, %v893
          %v895 = vpop.f32.mrf.mxu0
          %v896 = vpop.f32.mrf.mxu0
          %v897 = vadd.f32 0.0, %v896
          %v898 = vpop.f32.mrf.mxu0
          %899 = vmatprep.mubr.bf16.mxu0 0
          %900 = vmatmul.mubr.bf16.gmra.mxu0 %v726
          %v901 = vpop.f32.mrf.mxu0
          %v902 = vadd.f32 0.0, %v901
          %v903 = vpop.f32.mrf.mxu0
          %v904 = vpop.f32.mrf.mxu0
          %v905 = vadd.f32 0.0, %v904
          %v906 = vpop.f32.mrf.mxu0
          %907 = vmatprep.mubr.bf16.mxu0 0
          %908 = vmatmul.mubr.bf16.gmra.mxu0 %v727
          %v909 = vpop.f32.mrf.mxu0
          %v910 = vadd.f32 0.0, %v909
          %v911 = vpop.f32.mrf.mxu0
          %v912 = vpop.f32.mrf.mxu0
          %v913 = vadd.f32 0.0, %v912
          %v914 = vpop.f32.mrf.mxu0
          %915 = vmatprep.mubr.bf16.mxu0 0
          %916 = vmatmul.mubr.bf16.gmra.mxu0 %v728
          %v917 = vpop.f32.mrf.mxu0
          %v918 = vadd.f32 0.0, %v917
          %v919 = vpop.f32.mrf.mxu0
          %v920 = vpop.f32.mrf.mxu0
          %v921 = vadd.f32 0.0, %v920
          %v922 = vpop.f32.mrf.mxu0
          %923 = vdwg.mxu0
          %v924 = vpack.c.bf16 %v785, %v782
          %v925 = vpack.c.bf16 %v793, %v790
          %v926 = vpack.c.bf16 %v801, %v798
          %v927 = vpack.c.bf16 %v809, %v806
          %v928 = vpack.c.bf16 %v817, %v814
          %v929 = vpack.c.bf16 %v825, %v822
          %v930 = vpack.c.bf16 %v833, %v830
          %v931 = vpack.c.bf16 %v841, %v838
          %v932 = vpack.c.bf16 %v849, %v846
          %v933 = vpack.c.bf16 %v857, %v854
          %v934 = vpack.c.bf16 %v865, %v862
          %v935 = vpack.c.bf16 %v873, %v870
          %v936 = vpack.c.bf16 %v881, %v878
          %v937 = vpack.c.bf16 %v889, %v886
          %v938 = vpack.c.bf16 %v897, %v894
          %v939 = vpack.c.bf16 %v905, %v902
          %v940 = vpack.c.bf16 %v913, %v910
          %v941 = vpack.c.bf16 %v921, %v918
          %v942 = vld [vmem:[%s3] sm:$0xf]
          %s943 = scalar_lea.vmem %s3, 4
          %v944 = vld [vmem:[%s943] sm:$0xf]
          %vm945 = vcmask 64512
          %v947 = vsel %vm945, %v926, 0
          %v950 = vsel %vm945, %v927, 0
          %vm952 = vcmask 1043456
          %v954 = vsel %vm952, %v944, 0
          %956 = vmatprep.subr.bf16.mxu0 0
          %957 = vmatpush1.bf16.msra.mxu0 0
          %958 = vmatprep.subr.bf16.mxu0 0
          %959 = vmatpush1.bf16.msra.mxu0 0
          %960 = vmatprep.subr.bf16.mxu0 0
          %961 = vmatpush1.bf16.msra.mxu0 0
          %962 = vmatprep.subr.bf16.mxu0 0
          %963 = vmatpush1.bf16.msra.mxu0 0
          %964 = vmatprep.subr.bf16.mxu0 0
          %965 = vmatpush1.bf16.msra.mxu0 0
          %966 = vmatprep.subr.bf16.mxu0 0
          %967 = vmatpush1.bf16.msra.mxu0 0
          %968 = vmatprep.subr.bf16.mxu0 0
          %969 = vmatpush1.bf16.msra.mxu0 0
          %970 = vmatprep.subr.bf16.mxu0 0
          %971 = vmatpush1.bf16.msra.mxu0 %v954
          %972 = vmatprep.subr.bf16.mxu0 0
          %973 = vmatpush2.bf16.msra.mxu0 0
          %974 = vmatprep.subr.bf16.mxu0 0
          %975 = vmatpush2.bf16.msra.mxu0 0
          %976 = vmatprep.subr.bf16.mxu0 0
          %977 = vmatpush2.bf16.msra.mxu0 0
          %978 = vmatprep.subr.bf16.mxu0 0
          %979 = vmatpush2.bf16.msra.mxu0 0
          %980 = vmatprep.subr.bf16.mxu0 0
          %981 = vmatpush2.bf16.msra.mxu0 0
          %982 = vmatprep.subr.bf16.mxu0 0
          %983 = vmatpush2.bf16.msra.mxu0 0
          %984 = vmatprep.subr.bf16.mxu0 0
          %985 = vmatpush2.bf16.msra.mxu0 0
          %986 = vmatprep.subr.bf16.mxu0 0
          %987 = vmatpush2.bf16.msra.mxu0 0
          %988 = vmatprep.mubr.bf16.mxu0 0
          %989 = vmatmul.mubr.bf16.gmra.mxu0 %v947
          %v990 = vpop.f32.mrf.mxu0
          %v991 = vadd.f32 0.0, %v990
          %v992 = vpop.f32.mrf.mxu0
          %v993 = vpop.f32.mrf.mxu0
          %v994 = vadd.f32 0.0, %v993
          %v995 = vpop.f32.mrf.mxu0
          %996 = vmatprep.mubr.bf16.mxu0 0
          %997 = vmatmul.mubr.bf16.gmra.mxu0 %v950
          %v998 = vpop.f32.mrf.mxu0
          %v999 = vadd.f32 0.0, %v998
          %v1000 = vpop.f32.mrf.mxu0
          %v1001 = vpop.f32.mrf.mxu0
          %v1002 = vadd.f32 0.0, %v1001
          %v1003 = vpop.f32.mrf.mxu0
          %1004 = vdwg.mxu0
          %v1006 = vsel %vm945, %v924, 0
          %v1009 = vsel %vm945, %v925, 0
          %v1012 = vsel %vm952, %v942, 0
          %1014 = vmatprep.subr.bf16.mxu0 0
          %1015 = vmatpush1.bf16.msra.mxu0 0
          %1016 = vmatprep.subr.bf16.mxu0 0
          %1017 = vmatpush1.bf16.msra.mxu0 0
          %1018 = vmatprep.subr.bf16.mxu0 0
          %1019 = vmatpush1.bf16.msra.mxu0 0
          %1020 = vmatprep.subr.bf16.mxu0 0
          %1021 = vmatpush1.bf16.msra.mxu0 0
          %1022 = vmatprep.subr.bf16.mxu0 0
          %1023 = vmatpush1.bf16.msra.mxu0 0
          %1024 = vmatprep.subr.bf16.mxu0 0
          %1025 = vmatpush1.bf16.msra.mxu0 0
          %1026 = vmatprep.subr.bf16.mxu0 0
          %1027 = vmatpush1.bf16.msra.mxu0 0
          %1028 = vmatprep.subr.bf16.mxu0 0
          %1029 = vmatpush1.bf16.msra.mxu0 %v1012
          %1030 = vmatprep.subr.bf16.mxu0 0
          %1031 = vmatpush2.bf16.msra.mxu0 0
          %1032 = vmatprep.subr.bf16.mxu0 0
          %1033 = vmatpush2.bf16.msra.mxu0 0
          %1034 = vmatprep.subr.bf16.mxu0 0
          %1035 = vmatpush2.bf16.msra.mxu0 0
          %1036 = vmatprep.subr.bf16.mxu0 0
          %1037 = vmatpush2.bf16.msra.mxu0 0
          %1038 = vmatprep.subr.bf16.mxu0 0
          %1039 = vmatpush2.bf16.msra.mxu0 0
          %1040 = vmatprep.subr.bf16.mxu0 0
          %1041 = vmatpush2.bf16.msra.mxu0 0
          %1042 = vmatprep.subr.bf16.mxu0 0
          %1043 = vmatpush2.bf16.msra.mxu0 0
          %1044 = vmatprep.subr.bf16.mxu0 0
          %1045 = vmatpush2.bf16.msra.mxu0 0
          %1046 = vmatprep.mubr.bf16.mxu0 0
          %1047 = vmatmul.mubr.bf16.gmra.mxu0 %v1006
          %v1048 = vpop.f32.mrf.mxu0
          %v1049 = vadd.f32 %v991, %v1048
          %v1050 = vpop.f32.mrf.mxu0
          %v1051 = vpop.f32.mrf.mxu0
          %v1052 = vadd.f32 %v994, %v1051
          %v1053 = vpop.f32.mrf.mxu0
          %1054 = vmatprep.mubr.bf16.mxu0 0
          %1055 = vmatmul.mubr.bf16.gmra.mxu0 %v1009
          %v1056 = vpop.f32.mrf.mxu0
          %v1057 = vadd.f32 %v999, %v1056
          %v1058 = vpop.f32.mrf.mxu0
          %v1059 = vpop.f32.mrf.mxu0
          %v1060 = vadd.f32 %v1002, %v1059
          %v1061 = vpop.f32.mrf.mxu0
          %1062 = vdwg.mxu0
          %s1063 = scalar_lea.vmem %s3, 8
          %v1064 = vld [vmem:[%s1063] sm:$0xf]
          %v1066 = vsel %vm945, %v928, 0
          %v1069 = vsel %vm945, %v929, 0
          %v1072 = vsel %vm952, %v1064, 0
          %1074 = vmatprep.subr.bf16.mxu0 0
          %1075 = vmatpush1.bf16.msra.mxu0 0
          %1076 = vmatprep.subr.bf16.mxu0 0
          %1077 = vmatpush1.bf16.msra.mxu0 0
          %1078 = vmatprep.subr.bf16.mxu0 0
          %1079 = vmatpush1.bf16.msra.mxu0 0
          %1080 = vmatprep.subr.bf16.mxu0 0
          %1081 = vmatpush1.bf16.msra.mxu0 0
          %1082 = vmatprep.subr.bf16.mxu0 0
          %1083 = vmatpush1.bf16.msra.mxu0 0
          %1084 = vmatprep.subr.bf16.mxu0 0
          %1085 = vmatpush1.bf16.msra.mxu0 0
          %1086 = vmatprep.subr.bf16.mxu0 0
          %1087 = vmatpush1.bf16.msra.mxu0 0
          %1088 = vmatprep.subr.bf16.mxu0 0
          %1089 = vmatpush1.bf16.msra.mxu0 %v1072
          %1090 = vmatprep.subr.bf16.mxu0 0
          %1091 = vmatpush2.bf16.msra.mxu0 0
          %1092 = vmatprep.subr.bf16.mxu0 0
          %1093 = vmatpush2.bf16.msra.mxu0 0
          %1094 = vmatprep.subr.bf16.mxu0 0
          %1095 = vmatpush2.bf16.msra.mxu0 0
          %1096 = vmatprep.subr.bf16.mxu0 0
          %1097 = vmatpush2.bf16.msra.mxu0 0
          %1098 = vmatprep.subr.bf16.mxu0 0
          %1099 = vmatpush2.bf16.msra.mxu0 0
          %1100 = vmatprep.subr.bf16.mxu0 0
          %1101 = vmatpush2.bf16.msra.mxu0 0
          %1102 = vmatprep.subr.bf16.mxu0 0
          %1103 = vmatpush2.bf16.msra.mxu0 0
          %1104 = vmatprep.subr.bf16.mxu0 0
          %1105 = vmatpush2.bf16.msra.mxu0 0
          %1106 = vmatprep.mubr.bf16.mxu0 0
          %1107 = vmatmul.mubr.bf16.gmra.mxu0 %v1066
          %v1108 = vpop.f32.mrf.mxu0
          %v1109 = vadd.f32 0.0, %v1108
          %v1110 = vpop.f32.mrf.mxu0
          %v1111 = vpop.f32.mrf.mxu0
          %v1112 = vadd.f32 0.0, %v1111
          %v1113 = vpop.f32.mrf.mxu0
          %1114 = vmatprep.mubr.bf16.mxu0 0
          %1115 = vmatmul.mubr.bf16.gmra.mxu0 %v1069
          %v1116 = vpop.f32.mrf.mxu0
          %v1117 = vadd.f32 0.0, %v1116
          %v1118 = vpop.f32.mrf.mxu0
          %v1119 = vpop.f32.mrf.mxu0
          %v1120 = vadd.f32 0.0, %v1119
          %v1121 = vpop.f32.mrf.mxu0
          %1122 = vdwg.mxu0
          %v1123 = vadd.f32 %v1049, %v1109
          %v1124 = vadd.f32 %v1052, %v1112
          %v1125 = vadd.f32 %v1057, %v1117
          %v1126 = vadd.f32 %v1060, %v1120
          %s1127 = scalar_lea.vmem %s3, 12
          %v1128 = vld [vmem:[%s1127] sm:$0xf]
          %v1130 = vsel %vm945, %v930, 0
          %v1133 = vsel %vm945, %v931, 0
          %v1136 = vsel %vm952, %v1128, 0
          %1138 = vmatprep.subr.bf16.mxu0 0
          %1139 = vmatpush1.bf16.msra.mxu0 0
          %1140 = vmatprep.subr.bf16.mxu0 0
          %1141 = vmatpush1.bf16.msra.mxu0 0
          %1142 = vmatprep.subr.bf16.mxu0 0
          %1143 = vmatpush1.bf16.msra.mxu0 0
          %1144 = vmatprep.subr.bf16.mxu0 0
          %1145 = vmatpush1.bf16.msra.mxu0 0
          %1146 = vmatprep.subr.bf16.mxu0 0
          %1147 = vmatpush1.bf16.msra.mxu0 0
          %1148 = vmatprep.subr.bf16.mxu0 0
          %1149 = vmatpush1.bf16.msra.mxu0 0
          %1150 = vmatprep.subr.bf16.mxu0 0
          %1151 = vmatpush1.bf16.msra.mxu0 0
          %1152 = vmatprep.subr.bf16.mxu0 0
          %1153 = vmatpush1.bf16.msra.mxu0 %v1136
          %1154 = vmatprep.subr.bf16.mxu0 0
          %1155 = vmatpush2.bf16.msra.mxu0 0
          %1156 = vmatprep.subr.bf16.mxu0 0
          %1157 = vmatpush2.bf16.msra.mxu0 0
          %1158 = vmatprep.subr.bf16.mxu0 0
          %1159 = vmatpush2.bf16.msra.mxu0 0
          %1160 = vmatprep.subr.bf16.mxu0 0
          %1161 = vmatpush2.bf16.msra.mxu0 0
          %1162 = vmatprep.subr.bf16.mxu0 0
          %1163 = vmatpush2.bf16.msra.mxu0 0
          %1164 = vmatprep.subr.bf16.mxu0 0
          %1165 = vmatpush2.bf16.msra.mxu0 0
          %1166 = vmatprep.subr.bf16.mxu0 0
          %1167 = vmatpush2.bf16.msra.mxu0 0
          %1168 = vmatprep.subr.bf16.mxu0 0
          %1169 = vmatpush2.bf16.msra.mxu0 0
          %1170 = vmatprep.mubr.bf16.mxu0 0
          %1171 = vmatmul.mubr.bf16.gmra.mxu0 %v1130
          %v1172 = vpop.f32.mrf.mxu0
          %v1173 = vadd.f32 0.0, %v1172
          %v1174 = vpop.f32.mrf.mxu0
          %v1175 = vpop.f32.mrf.mxu0
          %v1176 = vadd.f32 0.0, %v1175
          %v1177 = vpop.f32.mrf.mxu0
          %1178 = vmatprep.mubr.bf16.mxu0 0
          %1179 = vmatmul.mubr.bf16.gmra.mxu0 %v1133
          %v1180 = vpop.f32.mrf.mxu0
          %v1181 = vadd.f32 0.0, %v1180
          %v1182 = vpop.f32.mrf.mxu0
          %v1183 = vpop.f32.mrf.mxu0
          %v1184 = vadd.f32 0.0, %v1183
          %v1185 = vpop.f32.mrf.mxu0
          %1186 = vdwg.mxu0
          %v1187 = vadd.f32 %v1123, %v1173
          %v1188 = vadd.f32 %v1124, %v1176
          %v1189 = vadd.f32 %v1125, %v1181
          %v1190 = vadd.f32 %v1126, %v1184
          %s1191 = scalar_lea.vmem %s3, 16
          %v1192 = vld [vmem:[%s1191] sm:$0xf]
          %v1194 = vsel %vm945, %v932, 0
          %v1197 = vsel %vm945, %v933, 0
          %v1200 = vsel %vm952, %v1192, 0
          %1202 = vmatprep.subr.bf16.mxu0 0
          %1203 = vmatpush1.bf16.msra.mxu0 0
          %1204 = vmatprep.subr.bf16.mxu0 0
          %1205 = vmatpush1.bf16.msra.mxu0 0
          %1206 = vmatprep.subr.bf16.mxu0 0
          %1207 = vmatpush1.bf16.msra.mxu0 0
          %1208 = vmatprep.subr.bf16.mxu0 0
          %1209 = vmatpush1.bf16.msra.mxu0 0
          %1210 = vmatprep.subr.bf16.mxu0 0
          %1211 = vmatpush1.bf16.msra.mxu0 0
          %1212 = vmatprep.subr.bf16.mxu0 0
          %1213 = vmatpush1.bf16.msra.mxu0 0
          %1214 = vmatprep.subr.bf16.mxu0 0
          %1215 = vmatpush1.bf16.msra.mxu0 0
          %1216 = vmatprep.subr.bf16.mxu0 0
          %1217 = vmatpush1.bf16.msra.mxu0 %v1200
          %1218 = vmatprep.subr.bf16.mxu0 0
          %1219 = vmatpush2.bf16.msra.mxu0 0
          %1220 = vmatprep.subr.bf16.mxu0 0
          %1221 = vmatpush2.bf16.msra.mxu0 0
          %1222 = vmatprep.subr.bf16.mxu0 0
          %1223 = vmatpush2.bf16.msra.mxu0 0
          %1224 = vmatprep.subr.bf16.mxu0 0
          %1225 = vmatpush2.bf16.msra.mxu0 0
          %1226 = vmatprep.subr.bf16.mxu0 0
          %1227 = vmatpush2.bf16.msra.mxu0 0
          %1228 = vmatprep.subr.bf16.mxu0 0
          %1229 = vmatpush2.bf16.msra.mxu0 0
          %1230 = vmatprep.subr.bf16.mxu0 0
          %1231 = vmatpush2.bf16.msra.mxu0 0
          %1232 = vmatprep.subr.bf16.mxu0 0
          %1233 = vmatpush2.bf16.msra.mxu0 0
          %1234 = vmatprep.mubr.bf16.mxu0 0
          %1235 = vmatmul.mubr.bf16.gmra.mxu0 %v1194
          %v1236 = vpop.f32.mrf.mxu0
          %v1237 = vadd.f32 0.0, %v1236
          %v1238 = vpop.f32.mrf.mxu0
          %v1239 = vpop.f32.mrf.mxu0
          %v1240 = vadd.f32 0.0, %v1239
          %v1241 = vpop.f32.mrf.mxu0
          %1242 = vmatprep.mubr.bf16.mxu0 0
          %1243 = vmatmul.mubr.bf16.gmra.mxu0 %v1197
          %v1244 = vpop.f32.mrf.mxu0
          %v1245 = vadd.f32 0.0, %v1244
          %v1246 = vpop.f32.mrf.mxu0
          %v1247 = vpop.f32.mrf.mxu0
          %v1248 = vadd.f32 0.0, %v1247
          %v1249 = vpop.f32.mrf.mxu0
          %1250 = vdwg.mxu0
          %v1251 = vadd.f32 %v1187, %v1237
          %v1252 = vadd.f32 %v1188, %v1240
          %v1253 = vadd.f32 %v1189, %v1245
          %v1254 = vadd.f32 %v1190, %v1248
          %s1255 = scalar_lea.vmem %s3, 20
          %v1256 = vld [vmem:[%s1255] sm:$0xf]
          %v1258 = vsel %vm945, %v934, 0
          %v1261 = vsel %vm945, %v935, 0
          %v1264 = vsel %vm952, %v1256, 0
          %1266 = vmatprep.subr.bf16.mxu0 0
          %1267 = vmatpush1.bf16.msra.mxu0 0
          %1268 = vmatprep.subr.bf16.mxu0 0
          %1269 = vmatpush1.bf16.msra.mxu0 0
          %1270 = vmatprep.subr.bf16.mxu0 0
          %1271 = vmatpush1.bf16.msra.mxu0 0
          %1272 = vmatprep.subr.bf16.mxu0 0
          %1273 = vmatpush1.bf16.msra.mxu0 0
          %1274 = vmatprep.subr.bf16.mxu0 0
          %1275 = vmatpush1.bf16.msra.mxu0 0
          %1276 = vmatprep.subr.bf16.mxu0 0
          %1277 = vmatpush1.bf16.msra.mxu0 0
          %1278 = vmatprep.subr.bf16.mxu0 0
          %1279 = vmatpush1.bf16.msra.mxu0 0
          %1280 = vmatprep.subr.bf16.mxu0 0
          %1281 = vmatpush1.bf16.msra.mxu0 %v1264
          %1282 = vmatprep.subr.bf16.mxu0 0
          %1283 = vmatpush2.bf16.msra.mxu0 0
          %1284 = vmatprep.subr.bf16.mxu0 0
          %1285 = vmatpush2.bf16.msra.mxu0 0
          %1286 = vmatprep.subr.bf16.mxu0 0
          %1287 = vmatpush2.bf16.msra.mxu0 0
          %1288 = vmatprep.subr.bf16.mxu0 0
          %1289 = vmatpush2.bf16.msra.mxu0 0
          %1290 = vmatprep.subr.bf16.mxu0 0
          %1291 = vmatpush2.bf16.msra.mxu0 0
          %1292 = vmatprep.subr.bf16.mxu0 0
          %1293 = vmatpush2.bf16.msra.mxu0 0
          %1294 = vmatprep.subr.bf16.mxu0 0
          %1295 = vmatpush2.bf16.msra.mxu0 0
          %1296 = vmatprep.subr.bf16.mxu0 0
          %1297 = vmatpush2.bf16.msra.mxu0 0
          %1298 = vmatprep.mubr.bf16.mxu0 0
          %1299 = vmatmul.mubr.bf16.gmra.mxu0 %v1258
          %v1300 = vpop.f32.mrf.mxu0
          %v1301 = vadd.f32 0.0, %v1300
          %v1302 = vpop.f32.mrf.mxu0
          %v1303 = vpop.f32.mrf.mxu0
          %v1304 = vadd.f32 0.0, %v1303
          %v1305 = vpop.f32.mrf.mxu0
          %1306 = vmatprep.mubr.bf16.mxu0 0
          %1307 = vmatmul.mubr.bf16.gmra.mxu0 %v1261
          %v1308 = vpop.f32.mrf.mxu0
          %v1309 = vadd.f32 0.0, %v1308
          %v1310 = vpop.f32.mrf.mxu0
          %v1311 = vpop.f32.mrf.mxu0
          %v1312 = vadd.f32 0.0, %v1311
          %v1313 = vpop.f32.mrf.mxu0
          %1314 = vdwg.mxu0
          %v1315 = vadd.f32 %v1251, %v1301
          %v1316 = vadd.f32 %v1252, %v1304
          %v1317 = vadd.f32 %v1253, %v1309
          %v1318 = vadd.f32 %v1254, %v1312
          %s1319 = scalar_lea.vmem %s3, 24
          %v1320 = vld [vmem:[%s1319] sm:$0xf]
          %v1322 = vsel %vm945, %v936, 0
          %v1325 = vsel %vm945, %v937, 0
          %v1328 = vsel %vm952, %v1320, 0
          %1330 = vmatprep.subr.bf16.mxu0 0
          %1331 = vmatpush1.bf16.msra.mxu0 0
          %1332 = vmatprep.subr.bf16.mxu0 0
          %1333 = vmatpush1.bf16.msra.mxu0 0
          %1334 = vmatprep.subr.bf16.mxu0 0
          %1335 = vmatpush1.bf16.msra.mxu0 0
          %1336 = vmatprep.subr.bf16.mxu0 0
          %1337 = vmatpush1.bf16.msra.mxu0 0
          %1338 = vmatprep.subr.bf16.mxu0 0
          %1339 = vmatpush1.bf16.msra.mxu0 0
          %1340 = vmatprep.subr.bf16.mxu0 0
          %1341 = vmatpush1.bf16.msra.mxu0 0
          %1342 = vmatprep.subr.bf16.mxu0 0
          %1343 = vmatpush1.bf16.msra.mxu0 0
          %1344 = vmatprep.subr.bf16.mxu0 0
          %1345 = vmatpush1.bf16.msra.mxu0 %v1328
          %1346 = vmatprep.subr.bf16.mxu0 0
          %1347 = vmatpush2.bf16.msra.mxu0 0
          %1348 = vmatprep.subr.bf16.mxu0 0
          %1349 = vmatpush2.bf16.msra.mxu0 0
          %1350 = vmatprep.subr.bf16.mxu0 0
          %1351 = vmatpush2.bf16.msra.mxu0 0
          %1352 = vmatprep.subr.bf16.mxu0 0
          %1353 = vmatpush2.bf16.msra.mxu0 0
          %1354 = vmatprep.subr.bf16.mxu0 0
          %1355 = vmatpush2.bf16.msra.mxu0 0
          %1356 = vmatprep.subr.bf16.mxu0 0
          %1357 = vmatpush2.bf16.msra.mxu0 0
          %1358 = vmatprep.subr.bf16.mxu0 0
          %1359 = vmatpush2.bf16.msra.mxu0 0
          %1360 = vmatprep.subr.bf16.mxu0 0
          %1361 = vmatpush2.bf16.msra.mxu0 0
          %1362 = vmatprep.mubr.bf16.mxu0 0
          %1363 = vmatmul.mubr.bf16.gmra.mxu0 %v1322
          %v1364 = vpop.f32.mrf.mxu0
          %v1365 = vadd.f32 0.0, %v1364
          %v1366 = vpop.f32.mrf.mxu0
          %v1367 = vpop.f32.mrf.mxu0
          %v1368 = vadd.f32 0.0, %v1367
          %v1369 = vpop.f32.mrf.mxu0
          %1370 = vmatprep.mubr.bf16.mxu0 0
          %1371 = vmatmul.mubr.bf16.gmra.mxu0 %v1325
          %v1372 = vpop.f32.mrf.mxu0
          %v1373 = vadd.f32 0.0, %v1372
          %v1374 = vpop.f32.mrf.mxu0
          %v1375 = vpop.f32.mrf.mxu0
          %v1376 = vadd.f32 0.0, %v1375
          %v1377 = vpop.f32.mrf.mxu0
          %1378 = vdwg.mxu0
          %v1379 = vadd.f32 %v1315, %v1365
          %v1380 = vadd.f32 %v1316, %v1368
          %v1381 = vadd.f32 %v1317, %v1373
          %v1382 = vadd.f32 %v1318, %v1376
          %s1383 = scalar_lea.vmem %s3, 28
          %v1384 = vld [vmem:[%s1383] sm:$0xf]
          %v1386 = vsel %vm945, %v938, 0
          %v1389 = vsel %vm945, %v939, 0
          %v1392 = vsel %vm952, %v1384, 0
          %1394 = vmatprep.subr.bf16.mxu0 0
          %1395 = vmatpush1.bf16.msra.mxu0 0
          %1396 = vmatprep.subr.bf16.mxu0 0
          %1397 = vmatpush1.bf16.msra.mxu0 0
          %1398 = vmatprep.subr.bf16.mxu0 0
          %1399 = vmatpush1.bf16.msra.mxu0 0
          %1400 = vmatprep.subr.bf16.mxu0 0
          %1401 = vmatpush1.bf16.msra.mxu0 0
          %1402 = vmatprep.subr.bf16.mxu0 0
          %1403 = vmatpush1.bf16.msra.mxu0 0
          %1404 = vmatprep.subr.bf16.mxu0 0
          %1405 = vmatpush1.bf16.msra.mxu0 0
          %1406 = vmatprep.subr.bf16.mxu0 0
          %1407 = vmatpush1.bf16.msra.mxu0 0
          %1408 = vmatprep.subr.bf16.mxu0 0
          %1409 = vmatpush1.bf16.msra.mxu0 %v1392
          %1410 = vmatprep.subr.bf16.mxu0 0
          %1411 = vmatpush2.bf16.msra.mxu0 0
          %1412 = vmatprep.subr.bf16.mxu0 0
          %1413 = vmatpush2.bf16.msra.mxu0 0
          %1414 = vmatprep.subr.bf16.mxu0 0
          %1415 = vmatpush2.bf16.msra.mxu0 0
          %1416 = vmatprep.subr.bf16.mxu0 0
          %1417 = vmatpush2.bf16.msra.mxu0 0
          %1418 = vmatprep.subr.bf16.mxu0 0
          %1419 = vmatpush2.bf16.msra.mxu0 0
          %1420 = vmatprep.subr.bf16.mxu0 0
          %1421 = vmatpush2.bf16.msra.mxu0 0
          %1422 = vmatprep.subr.bf16.mxu0 0
          %1423 = vmatpush2.bf16.msra.mxu0 0
          %1424 = vmatprep.subr.bf16.mxu0 0
          %1425 = vmatpush2.bf16.msra.mxu0 0
          %1426 = vmatprep.mubr.bf16.mxu0 0
          %1427 = vmatmul.mubr.bf16.gmra.mxu0 %v1386
          %v1428 = vpop.f32.mrf.mxu0
          %v1429 = vadd.f32 0.0, %v1428
          %v1430 = vpop.f32.mrf.mxu0
          %v1431 = vpop.f32.mrf.mxu0
          %v1432 = vadd.f32 0.0, %v1431
          %v1433 = vpop.f32.mrf.mxu0
          %1434 = vmatprep.mubr.bf16.mxu0 0
          %1435 = vmatmul.mubr.bf16.gmra.mxu0 %v1389
          %v1436 = vpop.f32.mrf.mxu0
          %v1437 = vadd.f32 0.0, %v1436
          %v1438 = vpop.f32.mrf.mxu0
          %v1439 = vpop.f32.mrf.mxu0
          %v1440 = vadd.f32 0.0, %v1439
          %v1441 = vpop.f32.mrf.mxu0
          %1442 = vdwg.mxu0
          %v1443 = vadd.f32 %v1379, %v1429
          %v1444 = vadd.f32 %v1380, %v1432
          %v1445 = vadd.f32 %v1381, %v1437
          %v1446 = vadd.f32 %v1382, %v1440
          %s1447 = scalar_lea.vmem %s3, 32
          %v1448 = vld [vmem:[%s1447] sm:$0xf]
          %v1450 = vsel %vm945, %v940, 0
          %v1453 = vsel %vm945, %v941, 0
          %v1456 = vsel %vm952, %v1448, 0
          %1458 = vmatprep.subr.bf16.mxu0 0
          %1459 = vmatpush1.bf16.msra.mxu0 0
          %1460 = vmatprep.subr.bf16.mxu0 0
          %1461 = vmatpush1.bf16.msra.mxu0 0
          %1462 = vmatprep.subr.bf16.mxu0 0
          %1463 = vmatpush1.bf16.msra.mxu0 0
          %1464 = vmatprep.subr.bf16.mxu0 0
          %1465 = vmatpush1.bf16.msra.mxu0 0
          %1466 = vmatprep.subr.bf16.mxu0 0
          %1467 = vmatpush1.bf16.msra.mxu0 0
          %1468 = vmatprep.subr.bf16.mxu0 0
          %1469 = vmatpush1.bf16.msra.mxu0 0
          %1470 = vmatprep.subr.bf16.mxu0 0
          %1471 = vmatpush1.bf16.msra.mxu0 0
          %1472 = vmatprep.subr.bf16.mxu0 0
          %1473 = vmatpush1.bf16.msra.mxu0 %v1456
          %1474 = vmatprep.subr.bf16.mxu0 0
          %1475 = vmatpush2.bf16.msra.mxu0 0
          %1476 = vmatprep.subr.bf16.mxu0 0
          %1477 = vmatpush2.bf16.msra.mxu0 0
          %1478 = vmatprep.subr.bf16.mxu0 0
          %1479 = vmatpush2.bf16.msra.mxu0 0
          %1480 = vmatprep.subr.bf16.mxu0 0
          %1481 = vmatpush2.bf16.msra.mxu0 0
          %1482 = vmatprep.subr.bf16.mxu0 0
          %1483 = vmatpush2.bf16.msra.mxu0 0
          %1484 = vmatprep.subr.bf16.mxu0 0
          %1485 = vmatpush2.bf16.msra.mxu0 0
          %1486 = vmatprep.subr.bf16.mxu0 0
          %1487 = vmatpush2.bf16.msra.mxu0 0
          %1488 = vmatprep.subr.bf16.mxu0 0
          %1489 = vmatpush2.bf16.msra.mxu0 0
          %1490 = vmatprep.mubr.bf16.mxu0 0
          %1491 = vmatmul.mubr.bf16.gmra.mxu0 %v1450
          %v1492 = vpop.f32.mrf.mxu0
          %v1493 = vadd.f32 0.0, %v1492
          %v1494 = vpop.f32.mrf.mxu0
          %v1495 = vpop.f32.mrf.mxu0
          %v1496 = vadd.f32 0.0, %v1495
          %v1497 = vpop.f32.mrf.mxu0
          %1498 = vmatprep.mubr.bf16.mxu0 0
          %1499 = vmatmul.mubr.bf16.gmra.mxu0 %v1453
          %v1500 = vpop.f32.mrf.mxu0
          %v1501 = vadd.f32 0.0, %v1500
          %v1502 = vpop.f32.mrf.mxu0
          %v1503 = vpop.f32.mrf.mxu0
          %v1504 = vadd.f32 0.0, %v1503
          %v1505 = vpop.f32.mrf.mxu0
          %1506 = vdwg.mxu0
          %v1507 = vadd.f32 %v1443, %v1493
          %v1508 = vadd.f32 %v1444, %v1496
          %v1509 = vadd.f32 %v1445, %v1501
          %v1510 = vadd.f32 %v1446, %v1504
          %v1511 = vld [vmem:[%s4] sm:$0x1]
          %v1513 = vlaneseq
          %v1514 = vshrl.u32 %v1513, 7
          %v1515 = vsub.s32 0, %v1514
          %v1516 = vrot.slane %v1511, %v1515
          %v1518 = vadd.f32 %v1507, %v1516
          %v1519 = vadd.f32 %v1508, %v1516
          %v1520 = vadd.f32 %v1509, %v1516
          %v1521 = vadd.f32 %v1510, %v1516
          %v1522 = vmax.f32 %v1518, 0.0
          %v1523 = vmax.f32 %v1519, 0.0
          %v1524 = vmax.f32 %v1520, 0.0
          %v1525 = vmax.f32 %v1521, 0.0
          %v1526 = vpack.c.bf16 %v1523, %v1522
          %v1527 = vpack.c.bf16 %v1525, %v1524
          %1528 = vst [vmem:[#allocation2] sm:$0xff] 0
          %vm1529 = vcmask 122880
          %1530 = vst.msk [vmem:[#allocation2] sm:$0x1] %vm1529, %v1526
          %v1532 = vunpack.c.l.b16 %v1526
          %v1533 = vpack.c.b16 %v1532, %v1532
          %v1534 = vrot.slane %v1533, 5
          %v1535 = vrot.slane %v1534, 4
          %1536 = vrot.lane.b32.xlu0 %v1535, 16
          %v1537 = vpop.permute.xlu0 %1536
          %vm1539 = vcmask 254080
          %1540 = vst.msk [vmem:[#allocation2] sm:$0x1] %vm1539, %v1537
          %v1541 = vrot.slane %v1533, 6
          %v1542 = vrot.slane %v1541, 4
          %1543 = vrot.lane.b32.xlu0 %v1542, 32
          %v1544 = vpop.permute.xlu0 %1543
          %vm1546 = vcmask 385280
          %1547 = vst.msk [vmem:[#allocation2] sm:$0x1] %vm1546, %v1544
          %v1548 = vrot.slane %v1533, 7
          %v1549 = vrot.slane %v1548, 4
          %1550 = vrot.lane.b32.xlu0 %v1549, 48
          %v1551 = vpop.permute.xlu0 %1550
          %vm1553 = vcmask 516480
          %1554 = vst.msk [vmem:[#allocation2] sm:$0x1] %vm1553, %v1551
          %v1555 = vunpack.c.h.b16 %v1526
          %v1556 = vpack.c.b16 %v1555, %v1555
          %1557 = vrot.lane.b32.xlu0 %v1556, 64
          %v1558 = vpop.permute.xlu0 %1557
          %vm1560 = vcmask 647680
          %1561 = vst.msk [vmem:[#allocation2] sm:$0x1] %vm1560, %v1558
          %v1562 = vrot.slane %v1556, 5
          %v1563 = vrot.slane %v1562, 4
          %1564 = vrot.lane.b32.xlu0 %v1563, 80
          %v1565 = vpop.permute.xlu0 %1564
          %vm1567 = vcmask 778880
          %1568 = vst.msk [vmem:[#allocation2] sm:$0x1] %vm1567, %v1565
          %v1569 = vrot.slane %v1556, 6
          %v1570 = vrot.slane %v1569, 4
          %1571 = vrot.lane.b32.xlu0 %v1570, 96
          %v1572 = vpop.permute.xlu0 %1571
          %vm1574 = vcmask 910080
          %1575 = vst.msk [vmem:[#allocation2] sm:$0x1] %vm1574, %v1572
          %v1576 = vrot.slane %v1556, 7
          %v1577 = vrot.slane %v1576, 4
          %1578 = vrot.lane.b32.xlu0 %v1577, 112
          %v1579 = vpop.permute.xlu0 %1578
          %vm1581 = vcmask 1041280
          %1582 = vst.msk [vmem:[#allocation2] sm:$0x1] %vm1581, %v1579
          %1583 = vst.msk [vmem:[#allocation2 + $0x4] sm:$0x1] %vm1529, %v1527
          %v1585 = vunpack.c.l.b16 %v1527
          %v1586 = vpack.c.b16 %v1585, %v1585
          %v1587 = vrot.slane %v1586, 5
          %v1588 = vrot.slane %v1587, 4
          %1589 = vrot.lane.b32.xlu0 %v1588, 16
          %v1590 = vpop.permute.xlu0 %1589
          %1592 = vst.msk [vmem:[#allocation2 + $0x4] sm:$0x1] %vm1539, %v1590
          %v1593 = vrot.slane %v1586, 6
          %v1594 = vrot.slane %v1593, 4
          %1595 = vrot.lane.b32.xlu0 %v1594, 32
          %v1596 = vpop.permute.xlu0 %1595
          %1598 = vst.msk [vmem:[#allocation2 + $0x4] sm:$0x1] %vm1546, %v1596
          %v1599 = vrot.slane %v1586, 7
          %v1600 = vrot.slane %v1599, 4
          %1601 = vrot.lane.b32.xlu0 %v1600, 48
          %v1602 = vpop.permute.xlu0 %1601
          %1604 = vst.msk [vmem:[#allocation2 + $0x4] sm:$0x1] %vm1553, %v1602
          %v1605 = vunpack.c.h.b16 %v1527
          %v1606 = vpack.c.b16 %v1605, %v1605
          %1607 = vrot.lane.b32.xlu0 %v1606, 64
          %v1608 = vpop.permute.xlu0 %1607
          %1610 = vst.msk [vmem:[#allocation2 + $0x4] sm:$0x1] %vm1560, %v1608
          %v1611 = vrot.slane %v1606, 5
          %v1612 = vrot.slane %v1611, 4
          %1613 = vrot.lane.b32.xlu0 %v1612, 80
          %v1614 = vpop.permute.xlu0 %1613
          %1616 = vst.msk [vmem:[#allocation2 + $0x4] sm:$0x1] %vm1567, %v1614
          %v1617 = vrot.slane %v1606, 6
          %v1618 = vrot.slane %v1617, 4
          %1619 = vrot.lane.b32.xlu0 %v1618, 96
          %v1620 = vpop.permute.xlu0 %1619
          %1622 = vst.msk [vmem:[#allocation2 + $0x4] sm:$0x1] %vm1574, %v1620
          %v1623 = vrot.slane %v1606, 7
          %v1624 = vrot.slane %v1623, 4
          %1625 = vrot.lane.b32.xlu0 %v1624, 112
          %v1626 = vpop.permute.xlu0 %1625
          %1628 = vst.msk [vmem:[#allocation2 + $0x4] sm:$0x1] %vm1581, %v1626
        $region64: #{pretrain_classifier_forward.1} parent=55 // pred_fallthru
          _
        %v1629 = vld [vmem:[#allocation2] sm:$0xff]
        %v1630 = vld [vmem:[%s329] sm:$0xff]
        %v1631 = vld [vmem:[%s329 + $0x8] sm:$0xff]
        %v1632 = vld [vmem:[%s329 + $0x10] sm:$0xff]
        %v1633 = vld [vmem:[%s329 + $0x18] sm:$0xff]
        %v1634 = vld [vmem:[%s329 + $0x20] sm:$0xff]
        %v1635 = vld [vmem:[%s329 + $0x28] sm:$0xff]
        %v1636 = vld [vmem:[%s329 + $0x30] sm:$0xff]
        %v1637 = vld [vmem:[%s329 + $0x38] sm:$0xff]
        %v1638 = vld [vmem:[%s329 + $0x40] sm:$0xff]
        %v1639 = vld [vmem:[%s329 + $0x48] sm:$0xff]
        %v1640 = vld [vmem:[%s329 + $0x50] sm:$0xff]
        %v1641 = vld [vmem:[%s329 + $0x58] sm:$0xff]
        %v1642 = vld [vmem:[%s329 + $0x60] sm:$0xff]
        %v1643 = vld [vmem:[%s329 + $0x68] sm:$0xff]
        %v1644 = vld [vmem:[%s329 + $0x70] sm:$0xff]
        %v1645 = vld [vmem:[%s329 + $0x78] sm:$0xff]
        %v1646 = vld [vmem:[%s329 + $0x80] sm:$0xff]
        %v1647 = vld [vmem:[%s329 + $0x88] sm:$0xff]
        %v1648 = vld [vmem:[%s329 + $0x90] sm:$0xff]
        %v1649 = vld [vmem:[%s329 + $0x98] sm:$0xff]
        %v1650 = vld [vmem:[%s329 + $0xa0] sm:$0xff]
        %v1651 = vld [vmem:[%s329 + $0xa8] sm:$0xff]
        %v1652 = vld [vmem:[%s329 + $0xb0] sm:$0xff]
        %v1653 = vld [vmem:[%s329 + $0xb8] sm:$0xff]
        %v1654 = vld [vmem:[%s329 + $0xc0] sm:$0xff]
        %v1655 = vld [vmem:[%s329 + $0xc8] sm:$0xff]
        %v1656 = vld [vmem:[%s329 + $0xd0] sm:$0xff]
        %v1657 = vld [vmem:[%s329 + $0xd8] sm:$0xff]
        %v1658 = vld [vmem:[%s329 + $0xe0] sm:$0xff]
        %v1659 = vld [vmem:[%s329 + $0xe8] sm:$0xff]
        %v1660 = vld [vmem:[%s329 + $0xf0] sm:$0xff]
        %v1661 = vld [vmem:[%s329 + $0xf8] sm:$0xff]
        %v1662 = vld [vmem:[%s329 + $0x100] sm:$0xff]
        %v1663 = vld [vmem:[%s329 + $0x108] sm:$0xff]
        %v1664 = vld [vmem:[%s329 + $0x110] sm:$0xff]
        %v1665 = vld [vmem:[%s329 + $0x118] sm:$0xff]
        %v1666 = vld [vmem:[%s329 + $0x120] sm:$0xff]
        %v1667 = vld [vmem:[%s329 + $0x128] sm:$0xff]
        %v1668 = vld [vmem:[%s329 + $0x130] sm:$0xff]
        %v1669 = vld [vmem:[%s329 + $0x138] sm:$0xff]
        %v1670 = vld [vmem:[%s329 + $0x140] sm:$0xff]
        %v1671 = vld [vmem:[%s329 + $0x148] sm:$0xff]
        %v1672 = vld [vmem:[%s329 + $0x150] sm:$0xff]
        %v1673 = vld [vmem:[%s329 + $0x158] sm:$0xff]
        %v1674 = vld [vmem:[%s329 + $0x160] sm:$0xff]
        %v1675 = vld [vmem:[%s329 + $0x168] sm:$0xff]
        %v1676 = vld [vmem:[%s329 + $0x170] sm:$0xff]
        %v1677 = vld [vmem:[%s329 + $0x178] sm:$0xff]
        %v1678 = vld [vmem:[%s329 + $0x180] sm:$0xff]
        %v1679 = vld [vmem:[%s329 + $0x188] sm:$0xff]
        %v1680 = vld [vmem:[%s329 + $0x190] sm:$0xff]
        %v1681 = vld [vmem:[%s329 + $0x198] sm:$0xff]
        %v1682 = vld [vmem:[%s329 + $0x1a0] sm:$0xff]
        %v1683 = vld [vmem:[%s329 + $0x1a8] sm:$0xff]
        %v1684 = vld [vmem:[%s329 + $0x1b0] sm:$0xff]
        %v1685 = vld [vmem:[%s329 + $0x1b8] sm:$0xff]
        %v1686 = vld [vmem:[%s329 + $0x1c0] sm:$0xff]
        %v1687 = vld [vmem:[%s329 + $0x1c8] sm:$0xff]
        %v1688 = vld [vmem:[%s329 + $0x1d0] sm:$0xff]
        %v1689 = vld [vmem:[%s329 + $0x1d8] sm:$0xff]
        %v1690 = vld [vmem:[%s329 + $0x1e0] sm:$0xff]
        %v1691 = vld [vmem:[%s329 + $0x1e8] sm:$0xff]
        %v1692 = vld [vmem:[%s329 + $0x1f0] sm:$0xff]
        %v1693 = vld [vmem:[%s329 + $0x1f8] sm:$0xff]
        %v1694 = vld [vmem:[%s372] sm:$0xf]
        %v1696 = vlaneseq
        %v1697 = vshrl.u32 %v1696, 7
        %v1698 = vsub.s32 0, %v1697
        %v1699 = vrot.slane %v1694, %v1698
        %v1700 = vlaneseq
        %v1701 = vshrl.u32 %v1700, 7
        %v1702 = vsub.s32 1, %v1701
        %v1703 = vrot.slane %v1694, %v1702
        %v1704 = vlaneseq
        %v1705 = vshrl.u32 %v1704, 7
        %v1706 = vsub.s32 2, %v1705
        %v1707 = vrot.slane %v1694, %v1706
        %v1708 = vlaneseq
        %v1709 = vshrl.u32 %v1708, 7
        %v1710 = vsub.s32 3, %v1709
        %v1711 = vrot.slane %v1694, %v1710
        %v1717 = vunpack.c.l.b16 %v1629
        %v1718 = vunpack.c.h.b16 %v1629
        %v1719 = vpack.c.b16 %v1717, %v1717
        %v1720 = vpack.c.b16 %v1718, %v1718
        %v1787 = vunpack.c.l.b16 %v1630
        %v1788 = vunpack.c.h.b16 %v1630
        %v1789 = vunpack.c.l.b16 %v1631
        %v1790 = vunpack.c.h.b16 %v1631
        %v1791 = vunpack.c.l.b16 %v1632
        %v1792 = vunpack.c.h.b16 %v1632
        %v1793 = vunpack.c.l.b16 %v1633
        %v1794 = vunpack.c.h.b16 %v1633
        %v1795 = vunpack.c.l.b16 %v1634
        %v1796 = vunpack.c.h.b16 %v1634
        %v1797 = vunpack.c.l.b16 %v1635
        %v1798 = vunpack.c.h.b16 %v1635
        %v1799 = vunpack.c.l.b16 %v1636
        %v1800 = vunpack.c.h.b16 %v1636
        %v1801 = vunpack.c.l.b16 %v1637
        %v1802 = vunpack.c.h.b16 %v1637
        %v1803 = vunpack.c.l.b16 %v1638
        %v1804 = vunpack.c.h.b16 %v1638
        %v1805 = vunpack.c.l.b16 %v1639
        %v1806 = vunpack.c.h.b16 %v1639
        %v1807 = vunpack.c.l.b16 %v1640
        %v1808 = vunpack.c.h.b16 %v1640
        %v1809 = vunpack.c.l.b16 %v1641
        %v1810 = vunpack.c.h.b16 %v1641
        %v1811 = vunpack.c.l.b16 %v1642
        %v1812 = vunpack.c.h.b16 %v1642
        %v1813 = vunpack.c.l.b16 %v1643
        %v1814 = vunpack.c.h.b16 %v1643
        %v1815 = vunpack.c.l.b16 %v1644
        %v1816 = vunpack.c.h.b16 %v1644
        %v1817 = vunpack.c.l.b16 %v1645
        %v1818 = vunpack.c.h.b16 %v1645
        %v1819 = vunpack.c.l.b16 %v1646
        %v1820 = vunpack.c.h.b16 %v1646
        %v1821 = vunpack.c.l.b16 %v1647
        %v1822 = vunpack.c.h.b16 %v1647
        %v1823 = vunpack.c.l.b16 %v1648
        %v1824 = vunpack.c.h.b16 %v1648
        %v1825 = vunpack.c.l.b16 %v1649
        %v1826 = vunpack.c.h.b16 %v1649
        %v1827 = vunpack.c.l.b16 %v1650
        %v1828 = vunpack.c.h.b16 %v1650
        %v1829 = vunpack.c.l.b16 %v1651
        %v1830 = vunpack.c.h.b16 %v1651
        %v1831 = vunpack.c.l.b16 %v1652
        %v1832 = vunpack.c.h.b16 %v1652
        %v1833 = vunpack.c.l.b16 %v1653
        %v1834 = vunpack.c.h.b16 %v1653
        %v1835 = vunpack.c.l.b16 %v1654
        %v1836 = vunpack.c.h.b16 %v1654
        %v1837 = vunpack.c.l.b16 %v1655
        %v1838 = vunpack.c.h.b16 %v1655
        %v1839 = vunpack.c.l.b16 %v1656
        %v1840 = vunpack.c.h.b16 %v1656
        %v1841 = vunpack.c.l.b16 %v1657
        %v1842 = vunpack.c.h.b16 %v1657
        %v1843 = vunpack.c.l.b16 %v1658
        %v1844 = vunpack.c.h.b16 %v1658
        %v1845 = vunpack.c.l.b16 %v1659
        %v1846 = vunpack.c.h.b16 %v1659
        %v1847 = vunpack.c.l.b16 %v1660
        %v1848 = vunpack.c.h.b16 %v1660
        %v1849 = vunpack.c.l.b16 %v1661
        %v1850 = vunpack.c.h.b16 %v1661
        %v1851 = vunpack.c.l.b16 %v1662
        %v1852 = vunpack.c.h.b16 %v1662
        %v1853 = vunpack.c.l.b16 %v1663
        %v1854 = vunpack.c.h.b16 %v1663
        %v1855 = vunpack.c.l.b16 %v1664
        %v1856 = vunpack.c.h.b16 %v1664
        %v1857 = vunpack.c.l.b16 %v1665
        %v1858 = vunpack.c.h.b16 %v1665
        %v1859 = vunpack.c.l.b16 %v1666
        %v1860 = vunpack.c.h.b16 %v1666
        %v1861 = vunpack.c.l.b16 %v1667
        %v1862 = vunpack.c.h.b16 %v1667
        %v1863 = vunpack.c.l.b16 %v1668
        %v1864 = vunpack.c.h.b16 %v1668
        %v1865 = vunpack.c.l.b16 %v1669
        %v1866 = vunpack.c.h.b16 %v1669
        %v1867 = vunpack.c.l.b16 %v1670
        %v1868 = vunpack.c.h.b16 %v1670
        %v1869 = vunpack.c.l.b16 %v1671
        %v1870 = vunpack.c.h.b16 %v1671
        %v1871 = vunpack.c.l.b16 %v1672
        %v1872 = vunpack.c.h.b16 %v1672
        %v1873 = vunpack.c.l.b16 %v1673
        %v1874 = vunpack.c.h.b16 %v1673
        %v1875 = vunpack.c.l.b16 %v1674
        %v1876 = vunpack.c.h.b16 %v1674
        %v1877 = vunpack.c.l.b16 %v1675
        %v1878 = vunpack.c.h.b16 %v1675
        %v1879 = vunpack.c.l.b16 %v1676
        %v1880 = vunpack.c.h.b16 %v1676
        %v1881 = vunpack.c.l.b16 %v1677
        %v1882 = vunpack.c.h.b16 %v1677
        %v1883 = vunpack.c.l.b16 %v1678
        %v1884 = vunpack.c.h.b16 %v1678
        %v1885 = vunpack.c.l.b16 %v1679
        %v1886 = vunpack.c.h.b16 %v1679
        %v1887 = vunpack.c.l.b16 %v1680
        %v1888 = vunpack.c.h.b16 %v1680
        %v1889 = vunpack.c.l.b16 %v1681
        %v1890 = vunpack.c.h.b16 %v1681
        %v1891 = vunpack.c.l.b16 %v1682
        %v1892 = vunpack.c.h.b16 %v1682
        %v1893 = vunpack.c.l.b16 %v1683
        %v1894 = vunpack.c.h.b16 %v1683
        %v1895 = vunpack.c.l.b16 %v1684
        %v1896 = vunpack.c.h.b16 %v1684
        %v1897 = vunpack.c.l.b16 %v1685
        %v1898 = vunpack.c.h.b16 %v1685
        %v1899 = vunpack.c.l.b16 %v1686
        %v1900 = vunpack.c.h.b16 %v1686
        %v1901 = vunpack.c.l.b16 %v1687
        %v1902 = vunpack.c.h.b16 %v1687
        %v1903 = vunpack.c.l.b16 %v1688
        %v1904 = vunpack.c.h.b16 %v1688
        %v1905 = vunpack.c.l.b16 %v1689
        %v1906 = vunpack.c.h.b16 %v1689
        %v1907 = vunpack.c.l.b16 %v1690
        %v1908 = vunpack.c.h.b16 %v1690
        %v1909 = vunpack.c.l.b16 %v1691
        %v1910 = vunpack.c.h.b16 %v1691
        %v1911 = vunpack.c.l.b16 %v1692
        %v1912 = vunpack.c.h.b16 %v1692
        %v1913 = vunpack.c.l.b16 %v1693
        %v1914 = vunpack.c.h.b16 %v1693
        %v1915 = vpack.c.b16 %v1791, %v1787
        %v1916 = vpack.c.b16 %v1792, %v1788
        %v1917 = vpack.c.b16 %v1793, %v1789
        %v1918 = vpack.c.b16 %v1794, %v1790
        %v1919 = vpack.c.b16 %v1799, %v1795
        %v1920 = vpack.c.b16 %v1800, %v1796
        %v1921 = vpack.c.b16 %v1801, %v1797
        %v1922 = vpack.c.b16 %v1802, %v1798
        %v1923 = vpack.c.b16 %v1807, %v1803
        %v1924 = vpack.c.b16 %v1808, %v1804
        %v1925 = vpack.c.b16 %v1809, %v1805
        %v1926 = vpack.c.b16 %v1810, %v1806
        %v1927 = vpack.c.b16 %v1815, %v1811
        %v1928 = vpack.c.b16 %v1816, %v1812
        %v1929 = vpack.c.b16 %v1817, %v1813
        %v1930 = vpack.c.b16 %v1818, %v1814
        %v1931 = vpack.c.b16 %v1823, %v1819
        %v1932 = vpack.c.b16 %v1824, %v1820
        %v1933 = vpack.c.b16 %v1825, %v1821
        %v1934 = vpack.c.b16 %v1826, %v1822
        %v1935 = vpack.c.b16 %v1831, %v1827
        %v1936 = vpack.c.b16 %v1832, %v1828
        %v1937 = vpack.c.b16 %v1833, %v1829
        %v1938 = vpack.c.b16 %v1834, %v1830
        %v1939 = vpack.c.b16 %v1839, %v1835
        %v1940 = vpack.c.b16 %v1840, %v1836
        %v1941 = vpack.c.b16 %v1841, %v1837
        %v1942 = vpack.c.b16 %v1842, %v1838
        %v1943 = vpack.c.b16 %v1847, %v1843
        %v1944 = vpack.c.b16 %v1848, %v1844
        %v1945 = vpack.c.b16 %v1849, %v1845
        %v1946 = vpack.c.b16 %v1850, %v1846
        %v1947 = vpack.c.b16 %v1855, %v1851
        %v1948 = vpack.c.b16 %v1856, %v1852
        %v1949 = vpack.c.b16 %v1857, %v1853
        %v1950 = vpack.c.b16 %v1858, %v1854
        %v1951 = vpack.c.b16 %v1863, %v1859
        %v1952 = vpack.c.b16 %v1864, %v1860
        %v1953 = vpack.c.b16 %v1865, %v1861
        %v1954 = vpack.c.b16 %v1866, %v1862
        %v1955 = vpack.c.b16 %v1871, %v1867
        %v1956 = vpack.c.b16 %v1872, %v1868
        %v1957 = vpack.c.b16 %v1873, %v1869
        %v1958 = vpack.c.b16 %v1874, %v1870
        %v1959 = vpack.c.b16 %v1879, %v1875
        %v1960 = vpack.c.b16 %v1880, %v1876
        %v1961 = vpack.c.b16 %v1881, %v1877
        %v1962 = vpack.c.b16 %v1882, %v1878
        %v1963 = vpack.c.b16 %v1887, %v1883
        %v1964 = vpack.c.b16 %v1888, %v1884
        %v1965 = vpack.c.b16 %v1889, %v1885
        %v1966 = vpack.c.b16 %v1890, %v1886
        %v1967 = vpack.c.b16 %v1895, %v1891
        %v1968 = vpack.c.b16 %v1896, %v1892
        %v1969 = vpack.c.b16 %v1897, %v1893
        %v1970 = vpack.c.b16 %v1898, %v1894
        %v1971 = vpack.c.b16 %v1903, %v1899
        %v1972 = vpack.c.b16 %v1904, %v1900
        %v1973 = vpack.c.b16 %v1905, %v1901
        %v1974 = vpack.c.b16 %v1906, %v1902
        %v1975 = vpack.c.b16 %v1911, %v1907
        %v1976 = vpack.c.b16 %v1912, %v1908
        %v1977 = vpack.c.b16 %v1913, %v1909
        %v1978 = vpack.c.b16 %v1914, %v1910
        %2043 = vmatprep.subr.bf16.mxu0 %v1944
        %2044 = vmatpush1.bf16.msra.mxu0 %v1943
        %2045 = vmatprep.subr.bf16.mxu0 %v1940
        %2046 = vmatpush1.bf16.msra.mxu0 %v1939
        %2047 = vmatprep.subr.bf16.mxu0 %v1936
        %2048 = vmatpush1.bf16.msra.mxu0 %v1935
        %2049 = vmatprep.subr.bf16.mxu0 %v1932
        %2050 = vmatpush1.bf16.msra.mxu0 %v1931
        %2051 = vmatprep.subr.bf16.mxu0 %v1928
        %2052 = vmatpush1.bf16.msra.mxu0 %v1927
        %2053 = vmatprep.subr.bf16.mxu0 %v1924
        %2054 = vmatpush1.bf16.msra.mxu0 %v1923
        %2055 = vmatprep.subr.bf16.mxu0 %v1920
        %2056 = vmatpush1.bf16.msra.mxu0 %v1919
        %2057 = vmatprep.subr.bf16.mxu0 %v1916
        %2058 = vmatpush1.bf16.msra.mxu0 %v1915
        %2059 = vmatprep.subr.bf16.mxu0 %v1976
        %2060 = vmatpush2.bf16.msra.mxu0 %v1975
        %2061 = vmatprep.subr.bf16.mxu0 %v1972
        %2062 = vmatpush2.bf16.msra.mxu0 %v1971
        %2063 = vmatprep.subr.bf16.mxu0 %v1968
        %2064 = vmatpush2.bf16.msra.mxu0 %v1967
        %2065 = vmatprep.subr.bf16.mxu0 %v1964
        %2066 = vmatpush2.bf16.msra.mxu0 %v1963
        %2067 = vmatprep.subr.bf16.mxu0 %v1960
        %2068 = vmatpush2.bf16.msra.mxu0 %v1959
        %2069 = vmatprep.subr.bf16.mxu0 %v1956
        %2070 = vmatpush2.bf16.msra.mxu0 %v1955
        %2071 = vmatprep.subr.bf16.mxu0 %v1952
        %2072 = vmatpush2.bf16.msra.mxu0 %v1951
        %2073 = vmatprep.subr.bf16.mxu0 %v1948
        %2074 = vmatpush2.bf16.msra.mxu0 %v1947
        %2075 = vmatprep.mubr.bf16.mxu0 %v1720
        %2076 = vmatmul.mubr.bf16.gmra.mxu0 %v1719
        %v2077 = vpop.f32.mrf.mxu0
        %v2078 = vadd.f32 %v1699, %v2077
        %v2079 = vpop.f32.mrf.mxu0
        %v2080 = vadd.f32 %v1703, %v2079
        %v2081 = vpop.f32.mrf.mxu0
        %v2082 = vpop.f32.mrf.mxu0
        %2083 = vdwg.mxu0
        %2084 = vmatprep.subr.bf16.mxu0 %v1946
        %2085 = vmatpush1.bf16.msra.mxu0 %v1945
        %2086 = vmatprep.subr.bf16.mxu0 %v1942
        %2087 = vmatpush1.bf16.msra.mxu0 %v1941
        %2088 = vmatprep.subr.bf16.mxu0 %v1938
        %2089 = vmatpush1.bf16.msra.mxu0 %v1937
        %2090 = vmatprep.subr.bf16.mxu0 %v1934
        %2091 = vmatpush1.bf16.msra.mxu0 %v1933
        %2092 = vmatprep.subr.bf16.mxu0 %v1930
        %2093 = vmatpush1.bf16.msra.mxu0 %v1929
        %2094 = vmatprep.subr.bf16.mxu0 %v1926
        %2095 = vmatpush1.bf16.msra.mxu0 %v1925
        %2096 = vmatprep.subr.bf16.mxu0 %v1922
        %2097 = vmatpush1.bf16.msra.mxu0 %v1921
        %2098 = vmatprep.subr.bf16.mxu0 %v1918
        %2099 = vmatpush1.bf16.msra.mxu0 %v1917
        %2100 = vmatprep.subr.bf16.mxu0 %v1978
        %2101 = vmatpush2.bf16.msra.mxu0 %v1977
        %2102 = vmatprep.subr.bf16.mxu0 %v1974
        %2103 = vmatpush2.bf16.msra.mxu0 %v1973
        %2104 = vmatprep.subr.bf16.mxu0 %v1970
        %2105 = vmatpush2.bf16.msra.mxu0 %v1969
        %2106 = vmatprep.subr.bf16.mxu0 %v1966
        %2107 = vmatpush2.bf16.msra.mxu0 %v1965
        %2108 = vmatprep.subr.bf16.mxu0 %v1962
        %2109 = vmatpush2.bf16.msra.mxu0 %v1961
        %2110 = vmatprep.subr.bf16.mxu0 %v1958
        %2111 = vmatpush2.bf16.msra.mxu0 %v1957
        %2112 = vmatprep.subr.bf16.mxu0 %v1954
        %2113 = vmatpush2.bf16.msra.mxu0 %v1953
        %2114 = vmatprep.subr.bf16.mxu0 %v1950
        %2115 = vmatpush2.bf16.msra.mxu0 %v1949
        %2116 = vmatprep.mubr.bf16.mxu0 %v1720
        %2117 = vmatmul.mubr.bf16.gmra.mxu0 %v1719
        %v2118 = vpop.f32.mrf.mxu0
        %v2119 = vadd.f32 %v1707, %v2118
        %v2120 = vpop.f32.mrf.mxu0
        %v2121 = vadd.f32 %v1711, %v2120
        %v2122 = vpop.f32.mrf.mxu0
        %v2123 = vpop.f32.mrf.mxu0
        %2124 = vdwg.mxu0
        %v2125 = vmax.f32 %v2078, 0.0
        %v2126 = vmax.f32 %v2080, 0.0
        %v2127 = vmax.f32 %v2119, 0.0
        %v2128 = vmax.f32 %v2121, 0.0
        %v2129 = vpack.c.bf16 %v2125, %v2125
        %v2130 = vpack.c.bf16 %v2126, %v2126
        %v2131 = vpack.c.bf16 %v2127, %v2127
        %v2132 = vpack.c.bf16 %v2128, %v2128
        // Predicated region
        $region65: #{pretrain_classifier_forward.1} parent=55 // pred_check
          %p2133 = pneg %p381
        $region66: #{pretrain_classifier_forward.1} parent=55 // pred_check_branch
          %2135 = sbr.rel (%p2133) target = $region68
        $region67: #{pretrain_classifier_forward.1} parent=55 // pred_region
          %2136 = vst [vmem:[%s9] sm:$0xff] 0.0
        $region68: #{pretrain_classifier_forward.1} parent=55 // pred_fallthru
          _
        %v2137 = vld [vmem:[%s9] sm:$0xff]
        %v2138 = vld [vmem:[%s378] sm:$0xf]
        %v2139 = vld [vmem:[%s378 + $0x4] sm:$0xf]
        %v2140 = vld [vmem:[%s378 + $0x8] sm:$0xf]
        %v2141 = vld [vmem:[%s378 + $0xc] sm:$0xf]
        %v2142 = vld [vmem:[%s378 + $0x10] sm:$0xf]
        %v2143 = vld [vmem:[%s378 + $0x14] sm:$0xf]
        %v2144 = vld [vmem:[%s378 + $0x18] sm:$0xf]
        %v2145 = vld [vmem:[%s378 + $0x1c] sm:$0xf]
        %v2146 = vld [vmem:[%s378 + $0x20] sm:$0xf]
        %v2147 = vld [vmem:[%s378 + $0x24] sm:$0xf]
        %v2148 = vld [vmem:[%s378 + $0x28] sm:$0xf]
        %v2149 = vld [vmem:[%s378 + $0x2c] sm:$0xf]
        %v2150 = vld [vmem:[%s378 + $0x30] sm:$0xf]
        %v2151 = vld [vmem:[%s378 + $0x34] sm:$0xf]
        %v2152 = vld [vmem:[%s378 + $0x38] sm:$0xf]
        %v2153 = vld [vmem:[%s378 + $0x3c] sm:$0xf]
        %v2154 = vld [vmem:[%s378 + $0x40] sm:$0xf]
        %v2155 = vld [vmem:[%s378 + $0x44] sm:$0xf]
        %v2156 = vld [vmem:[%s378 + $0x48] sm:$0xf]
        %v2157 = vld [vmem:[%s378 + $0x4c] sm:$0xf]
        %v2158 = vld [vmem:[%s378 + $0x50] sm:$0xf]
        %v2159 = vld [vmem:[%s378 + $0x54] sm:$0xf]
        %v2160 = vld [vmem:[%s378 + $0x58] sm:$0xf]
        %v2161 = vld [vmem:[%s378 + $0x5c] sm:$0xf]
        %v2162 = vld [vmem:[%s378 + $0x60] sm:$0xf]
        %v2163 = vld [vmem:[%s378 + $0x64] sm:$0xf]
        %v2164 = vld [vmem:[%s378 + $0x68] sm:$0xf]
        %v2165 = vld [vmem:[%s378 + $0x6c] sm:$0xf]
        %v2166 = vld [vmem:[%s378 + $0x70] sm:$0xf]
        %v2167 = vld [vmem:[%s378 + $0x74] sm:$0xf]
        %v2168 = vld [vmem:[%s378 + $0x78] sm:$0xf]
        %v2169 = vld [vmem:[%s378 + $0x7c] sm:$0xf]
        %v2170 = vld [vmem:[%s378 + $0x80] sm:$0xf]
        %v2171 = vld [vmem:[%s378 + $0x84] sm:$0xf]
        %v2172 = vld [vmem:[%s378 + $0x88] sm:$0xf]
        %v2173 = vld [vmem:[%s378 + $0x8c] sm:$0xf]
        %v2174 = vld [vmem:[%s378 + $0x90] sm:$0xf]
        %v2175 = vld [vmem:[%s378 + $0x94] sm:$0xf]
        %v2176 = vld [vmem:[%s378 + $0x98] sm:$0xf]
        %v2177 = vld [vmem:[%s378 + $0x9c] sm:$0xf]
        %v2178 = vld [vmem:[%s378 + $0xa0] sm:$0xf]
        %v2179 = vld [vmem:[%s378 + $0xa4] sm:$0xf]
        %v2180 = vld [vmem:[%s378 + $0xa8] sm:$0xf]
        %v2181 = vld [vmem:[%s378 + $0xac] sm:$0xf]
        %v2182 = vld [vmem:[%s378 + $0xb0] sm:$0xf]
        %v2183 = vld [vmem:[%s378 + $0xb4] sm:$0xf]
        %v2184 = vld [vmem:[%s378 + $0xb8] sm:$0xf]
        %v2185 = vld [vmem:[%s378 + $0xbc] sm:$0xf]
        %v2186 = vld [vmem:[%s378 + $0xc0] sm:$0xf]
        %v2187 = vld [vmem:[%s378 + $0xc4] sm:$0xf]
        %v2188 = vld [vmem:[%s378 + $0xc8] sm:$0xf]
        %v2189 = vld [vmem:[%s378 + $0xcc] sm:$0xf]
        %v2190 = vld [vmem:[%s378 + $0xd0] sm:$0xf]
        %v2191 = vld [vmem:[%s378 + $0xd4] sm:$0xf]
        %v2192 = vld [vmem:[%s378 + $0xd8] sm:$0xf]
        %v2193 = vld [vmem:[%s378 + $0xdc] sm:$0xf]
        %v2194 = vld [vmem:[%s378 + $0xe0] sm:$0xf]
        %v2195 = vld [vmem:[%s378 + $0xe4] sm:$0xf]
        %v2196 = vld [vmem:[%s378 + $0xe8] sm:$0xf]
        %v2197 = vld [vmem:[%s378 + $0xec] sm:$0xf]
        %v2198 = vld [vmem:[%s378 + $0xf0] sm:$0xf]
        %v2199 = vld [vmem:[%s378 + $0xf4] sm:$0xf]
        %v2200 = vld [vmem:[%s378 + $0xf8] sm:$0xf]
        %v2201 = vld [vmem:[%s378 + $0xfc] sm:$0xf]
        %v2266 = vunpack.c.l.b16 %v2138
        %v2267 = vunpack.c.l.b16 %v2139
        %v2268 = vunpack.c.l.b16 %v2140
        %v2269 = vunpack.c.l.b16 %v2141
        %v2270 = vunpack.c.l.b16 %v2142
        %v2271 = vunpack.c.l.b16 %v2143
        %v2272 = vunpack.c.l.b16 %v2144
        %v2273 = vunpack.c.l.b16 %v2145
        %v2274 = vunpack.c.l.b16 %v2146
        %v2275 = vunpack.c.l.b16 %v2147
        %v2276 = vunpack.c.l.b16 %v2148
        %v2277 = vunpack.c.l.b16 %v2149
        %v2278 = vunpack.c.l.b16 %v2150
        %v2279 = vunpack.c.l.b16 %v2151
        %v2280 = vunpack.c.l.b16 %v2152
        %v2281 = vunpack.c.l.b16 %v2153
        %v2282 = vunpack.c.l.b16 %v2154
        %v2283 = vunpack.c.l.b16 %v2155
        %v2284 = vunpack.c.l.b16 %v2156
        %v2285 = vunpack.c.l.b16 %v2157
        %v2286 = vunpack.c.l.b16 %v2158
        %v2287 = vunpack.c.l.b16 %v2159
        %v2288 = vunpack.c.l.b16 %v2160
        %v2289 = vunpack.c.l.b16 %v2161
        %v2290 = vunpack.c.l.b16 %v2162
        %v2291 = vunpack.c.l.b16 %v2163
        %v2292 = vunpack.c.l.b16 %v2164
        %v2293 = vunpack.c.l.b16 %v2165
        %v2294 = vunpack.c.l.b16 %v2166
        %v2295 = vunpack.c.l.b16 %v2167
        %v2296 = vunpack.c.l.b16 %v2168
        %v2297 = vunpack.c.l.b16 %v2169
        %v2298 = vunpack.c.l.b16 %v2170
        %v2299 = vunpack.c.l.b16 %v2171
        %v2300 = vunpack.c.l.b16 %v2172
        %v2301 = vunpack.c.l.b16 %v2173
        %v2302 = vunpack.c.l.b16 %v2174
        %v2303 = vunpack.c.l.b16 %v2175
        %v2304 = vunpack.c.l.b16 %v2176
        %v2305 = vunpack.c.l.b16 %v2177
        %v2306 = vunpack.c.l.b16 %v2178
        %v2307 = vunpack.c.l.b16 %v2179
        %v2308 = vunpack.c.l.b16 %v2180
        %v2309 = vunpack.c.l.b16 %v2181
        %v2310 = vunpack.c.l.b16 %v2182
        %v2311 = vunpack.c.l.b16 %v2183
        %v2312 = vunpack.c.l.b16 %v2184
        %v2313 = vunpack.c.l.b16 %v2185
        %v2314 = vunpack.c.l.b16 %v2186
        %v2315 = vunpack.c.l.b16 %v2187
        %v2316 = vunpack.c.l.b16 %v2188
        %v2317 = vunpack.c.l.b16 %v2189
        %v2318 = vunpack.c.l.b16 %v2190
        %v2319 = vunpack.c.l.b16 %v2191
        %v2320 = vunpack.c.l.b16 %v2192
        %v2321 = vunpack.c.l.b16 %v2193
        %v2322 = vunpack.c.l.b16 %v2194
        %v2323 = vunpack.c.l.b16 %v2195
        %v2324 = vunpack.c.l.b16 %v2196
        %v2325 = vunpack.c.l.b16 %v2197
        %v2326 = vunpack.c.l.b16 %v2198
        %v2327 = vunpack.c.l.b16 %v2199
        %v2328 = vunpack.c.l.b16 %v2200
        %v2329 = vunpack.c.l.b16 %v2201
        %v2330 = vpack.c.b16 %v2267, %v2266
        %v2331 = vpack.c.b16 %v2269, %v2268
        %v2332 = vpack.c.b16 %v2271, %v2270
        %v2333 = vpack.c.b16 %v2273, %v2272
        %v2334 = vpack.c.b16 %v2275, %v2274
        %v2335 = vpack.c.b16 %v2277, %v2276
        %v2336 = vpack.c.b16 %v2279, %v2278
        %v2337 = vpack.c.b16 %v2281, %v2280
        %v2338 = vpack.c.b16 %v2283, %v2282
        %v2339 = vpack.c.b16 %v2285, %v2284
        %v2340 = vpack.c.b16 %v2287, %v2286
        %v2341 = vpack.c.b16 %v2289, %v2288
        %v2342 = vpack.c.b16 %v2291, %v2290
        %v2343 = vpack.c.b16 %v2293, %v2292
        %v2344 = vpack.c.b16 %v2295, %v2294
        %v2345 = vpack.c.b16 %v2297, %v2296
        %v2346 = vpack.c.b16 %v2299, %v2298
        %v2347 = vpack.c.b16 %v2301, %v2300
        %v2348 = vpack.c.b16 %v2303, %v2302
        %v2349 = vpack.c.b16 %v2305, %v2304
        %v2350 = vpack.c.b16 %v2307, %v2306
        %v2351 = vpack.c.b16 %v2309, %v2308
        %v2352 = vpack.c.b16 %v2311, %v2310
        %v2353 = vpack.c.b16 %v2313, %v2312
        %v2354 = vpack.c.b16 %v2315, %v2314
        %v2355 = vpack.c.b16 %v2317, %v2316
        %v2356 = vpack.c.b16 %v2319, %v2318
        %v2357 = vpack.c.b16 %v2321, %v2320
        %v2358 = vpack.c.b16 %v2323, %v2322
        %v2359 = vpack.c.b16 %v2325, %v2324
        %v2360 = vpack.c.b16 %v2327, %v2326
        %v2361 = vpack.c.b16 %v2329, %v2328
        %2394 = vmatprep.subr.bf16.mxu0 0
        %2395 = vmatpush1.bf16.msra.mxu0 %v2337
        %2396 = vmatprep.subr.bf16.mxu0 0
        %2397 = vmatpush1.bf16.msra.mxu0 %v2336
        %2398 = vmatprep.subr.bf16.mxu0 0
        %2399 = vmatpush1.bf16.msra.mxu0 %v2335
        %2400 = vmatprep.subr.bf16.mxu0 0
        %2401 = vmatpush1.bf16.msra.mxu0 %v2334
        %2402 = vmatprep.subr.bf16.mxu0 0
        %2403 = vmatpush1.bf16.msra.mxu0 %v2333
        %2404 = vmatprep.subr.bf16.mxu0 0
        %2405 = vmatpush1.bf16.msra.mxu0 %v2332
        %2406 = vmatprep.subr.bf16.mxu0 0
        %2407 = vmatpush1.bf16.msra.mxu0 %v2331
        %2408 = vmatprep.subr.bf16.mxu0 0
        %2409 = vmatpush1.bf16.msra.mxu0 %v2330
        %2410 = vmatprep.subr.bf16.mxu0 0
        %2411 = vmatpush2.bf16.msra.mxu0 %v2345
        %2412 = vmatprep.subr.bf16.mxu0 0
        %2413 = vmatpush2.bf16.msra.mxu0 %v2344
        %2414 = vmatprep.subr.bf16.mxu0 0
        %2415 = vmatpush2.bf16.msra.mxu0 %v2343
        %2416 = vmatprep.subr.bf16.mxu0 0
        %2417 = vmatpush2.bf16.msra.mxu0 %v2342
        %2418 = vmatprep.subr.bf16.mxu0 0
        %2419 = vmatpush2.bf16.msra.mxu0 %v2341
        %2420 = vmatprep.subr.bf16.mxu0 0
        %2421 = vmatpush2.bf16.msra.mxu0 %v2340
        %2422 = vmatprep.subr.bf16.mxu0 0
        %2423 = vmatpush2.bf16.msra.mxu0 %v2339
        %2424 = vmatprep.subr.bf16.mxu0 0
        %2425 = vmatpush2.bf16.msra.mxu0 %v2338
        %2426 = vmatprep.mubr.bf16.mxu0 %v2130
        %2427 = vmatmul.mubr.bf16.gmra.mxu0 %v2129
        %v2428 = vpop.f32.mrf.mxu0
        %v2429 = vadd.f32 0.0, %v2428
        %v2430 = vpop.f32.mrf.mxu0
        %v2431 = vpop.f32.mrf.mxu0
        %v2432 = vpop.f32.mrf.mxu0
        %2433 = vdwg.mxu0
        %2434 = vmatprep.subr.bf16.mxu0 0
        %2435 = vmatpush1.bf16.msra.mxu0 %v2353
        %2436 = vmatprep.subr.bf16.mxu0 0
        %2437 = vmatpush1.bf16.msra.mxu0 %v2352
        %2438 = vmatprep.subr.bf16.mxu0 0
        %2439 = vmatpush1.bf16.msra.mxu0 %v2351
        %2440 = vmatprep.subr.bf16.mxu0 0
        %2441 = vmatpush1.bf16.msra.mxu0 %v2350
        %2442 = vmatprep.subr.bf16.mxu0 0
        %2443 = vmatpush1.bf16.msra.mxu0 %v2349
        %2444 = vmatprep.subr.bf16.mxu0 0
        %2445 = vmatpush1.bf16.msra.mxu0 %v2348
        %2446 = vmatprep.subr.bf16.mxu0 0
        %2447 = vmatpush1.bf16.msra.mxu0 %v2347
        %2448 = vmatprep.subr.bf16.mxu0 0
        %2449 = vmatpush1.bf16.msra.mxu0 %v2346
        %2450 = vmatprep.subr.bf16.mxu0 0
        %2451 = vmatpush2.bf16.msra.mxu0 %v2361
        %2452 = vmatprep.subr.bf16.mxu0 0
        %2453 = vmatpush2.bf16.msra.mxu0 %v2360
        %2454 = vmatprep.subr.bf16.mxu0 0
        %2455 = vmatpush2.bf16.msra.mxu0 %v2359
        %2456 = vmatprep.subr.bf16.mxu0 0
        %2457 = vmatpush2.bf16.msra.mxu0 %v2358
        %2458 = vmatprep.subr.bf16.mxu0 0
        %2459 = vmatpush2.bf16.msra.mxu0 %v2357
        %2460 = vmatprep.subr.bf16.mxu0 0
        %2461 = vmatpush2.bf16.msra.mxu0 %v2356
        %2462 = vmatprep.subr.bf16.mxu0 0
        %2463 = vmatpush2.bf16.msra.mxu0 %v2355
        %2464 = vmatprep.subr.bf16.mxu0 0
        %2465 = vmatpush2.bf16.msra.mxu0 %v2354
        %2466 = vmatprep.mubr.bf16.mxu0 %v2132
        %2467 = vmatmul.mubr.bf16.gmra.mxu0 %v2131
        %v2468 = vpop.f32.mrf.mxu0
        %v2469 = vadd.f32 %v2429, %v2468
        %v2470 = vpop.f32.mrf.mxu0
        %v2471 = vpop.f32.mrf.mxu0
        %v2472 = vpop.f32.mrf.mxu0
        %2473 = vdwg.mxu0
        %v2474 = vadd.f32 %v2137, %v2469
        %2475 = vst [vmem:[%s9] sm:$0xff] %v2474
        %p2476 = scmp.eq.s32.totalorder %s23, 3
        // Predicated region
        $region69: #{pretrain_classifier_forward.1} parent=55 // pred_check
          %p2477 = pneg %p2476
        $region70: #{pretrain_classifier_forward.1} parent=55 // pred_check_branch
          %2479 = sbr.rel (%p2477) target = $region72
        $region71: #{pretrain_classifier_forward.1} parent=55 // pred_region
          %v2480 = vld [vmem:[%s9] sm:$0xff]
          %v2481 = vld [vmem:[%s8] sm:$0x1]
          %v2483 = vlaneseq
          %v2484 = vshrl.u32 %v2483, 7
          %v2485 = vsub.s32 0, %v2484
          %v2486 = vrot.slane %v2481, %v2485
          %v2488 = vadd.f32 %v2480, %v2486
          %2489 = vst [vmem:[%s9] sm:$0xff] %v2488
        $region72: #{pretrain_classifier_forward.1} parent=55 // pred_fallthru
          _
        // Predicated region
        $region73: #{pretrain_classifier_forward.1} parent=55 // pred_check
          %p2490 = pneg %p240
        $region74: #{pretrain_classifier_forward.1} parent=55 // pred_check_branch
          %2492 = sbr.rel (%p2490) target = $region76
        $region75: #{pretrain_classifier_forward.1} parent=55 // pred_region
          _
        $region76: #{pretrain_classifier_forward.1} parent=55 // pred_fallthru
          _
        // Predicated region
        $region77: #{pretrain_classifier_forward.1} parent=55 // pred_check
          %p2493 = pneg %p240
        $region78: #{pretrain_classifier_forward.1} parent=55 // pred_check_branch
          %2495 = sbr.rel (%p2493) target = $region80
        $region79: #{pretrain_classifier_forward.1} parent=55 // pred_region
          _
        $region80: #{pretrain_classifier_forward.1} parent=55 // pred_fallthru
          _
      $region56: #{pretrain_classifier_forward.1} parent=5 // pred_fallthru
        _
      %p2496 = scmp.le.s32.totalorder 2, %s18
      // Predicated region
      $region81: #{pretrain_classifier_forward.1} parent=5 // pred_check
        %p2497 = pneg %p2496
      $region82: #{pretrain_classifier_forward.1} parent=5 // pred_check_branch
        %2499 = sbr.rel (%p2497) target = $region84
      $region83: #{pretrain_classifier_forward.1} parent=5 // pred_region
        %s2500 = ssub.s32 %s18, 2
      $region84: #{pretrain_classifier_forward.1} parent=5 // pred_fallthru
        _
    $region6: #{pretrain_classifier_forward.1} parent=1 // loop_footer
      %s22 = sadd.s32 1, %s18
    $region7: #{pretrain_classifier_forward.1} parent=1 // loop_footer_branch
      %17 = sbr.rel target = $region3
    $region8: #{pretrain_classifier_forward.1} parent=1 // loop_exit
      _
    %2501 = vsyncpa [#allocation4], 1
    %s2502 = scalar_lea.sflag [#allocation4], 1
    %2503 = vsyncpa %s2502, 1

</llo_original>
